<compile_context>
chip_gen: v7x
topology: tpu7x:2x2x1
jax: 0.10.0
libtpu: 0.0.40
codegen_flags: <defaults>
</compile_context>

<pallas_src>
import numpy as np
import jax
import jax.numpy as jnp
from jax import lax
from jax.experimental import pallas as pl
from jax.experimental.pallas import tpu as pltpu

OUT_W = 24          # stat rows written per cluster (18 used + pad to multiple of 8)
_N_STATS = 18
_JACOBI_TINY = 1e-30


def _next_pow2(n):
    return 1 << max(0, int(np.ceil(np.log2(max(1, int(n))))))


def _pick_tile(M, C, n_planes):
    """Pick padded cluster count Cp, cluster tile TC (lane axis) and scoped VMEM limit."""
    Cp = max(128, _next_pow2(C))
    try:
        cap = int(pltpu.get_tpu_info().vmem_capacity_bytes)
    except Exception:
        cap = 64 << 20                                   # conservative: v7x per-core VMEM
    # Footprint model: 2*n_planes double-buffered [M,TC] input slabs
    # + ~14 live [M,TC] f32 temporaries in the streaming pass.
    slabs = 2 * n_planes + 14
    budget = min(40 << 20, max(16 << 20, cap - (24 << 20)))
    tc_budget = budget // (slabs * 4 * M)
    # Cap at 256: the 3x3 Jacobi keeps ~25 [1,TC] rows live -> TC=512 would spill vregs.
    tc_budget = max(128, min(256, (tc_budget // 128) * 128))
    # >=4 grid steps when Cp allows so each v7x core keeps intra-core double buffering.
    TC = min(tc_budget, max(128, Cp // 4))
    needed = slabs * 4 * M * TC
    vmem_limit = int(min(cap - (8 << 20), max(32 << 20, int(needed * 1.3) + (4 << 20))))
    return Cp, TC, vmem_limit


# ---------------------------------------------------------------------------
# Vectorized 3x3 symmetric eigensolver (cyclic Jacobi), entries are [1, TC].
# ---------------------------------------------------------------------------
def _jacobi_rotate(A, V, p, q):
    apq = A[p][q]
    app = A[p][p]
    aqq = A[q][q]
    abs_apq = jnp.abs(apq)
    live = abs_apq > _JACOBI_TINY
    safe = jnp.where(live, apq, 1.0)
    # Reciprocal-multiply (EUP) instead of a VPU divide; clip keeps theta finite.
    theta = (aqq - app) * (0.5 * pl.reciprocal(safe, approx=True))
    theta = jnp.clip(theta, -1e18, 1e18)
    sgn = jnp.where(theta >= 0.0, 1.0, -1.0)
    t = sgn * pl.reciprocal(jnp.abs(theta) + jnp.sqrt(theta * theta + 1.0), approx=True)
    t = jnp.where(live, t, 0.0)
    c = lax.rsqrt(t * t + 1.0)                           # EUP rsqrt: kills a sqrt + divide
    s = t * c
    r = 3 - p - q
    arp = A[r][p]
    arq = A[r][q]
    A[p][p] = app - t * apq
    A[q][q] = aqq + t * apq
    zero = jnp.zeros_like(apq)
    A[p][q] = zero
    A[q][p] = zero
    new_rp = c * arp - s * arq
    new_rq = s * arp + c * arq
    A[r][p] = new_rp
    A[p][r] = new_rp
    A[r][q] = new_rq
    A[q][r] = new_rq
    for i in range(3):
        vip = V[i][p]
        viq = V[i][q]
        V[i][p] = c * vip - s * viq
        V[i][q] = s * vip + c * viq


def _eigh3x3(axx, axy, axz, ayy, ayz, azz, sweeps=4):
    A = [[axx, axy, axz], [axy, ayy, ayz], [axz, ayz, azz]]
    one = jnp.ones_like(axx)
    zero = jnp.zeros_like(axx)
    V = [[one, zero, zero], [zero, one, zero], [zero, zero, one]]
    for _ in range(sweeps):
        for (p, q) in ((0, 1), (0, 2), (1, 2)):
            _jacobi_rotate(A, V, p, q)
    e0, e1, e2 = A[0][0], A[1][1], A[2][2]
    w2 = jnp.maximum(jnp.maximum(e0, e1), e2)            # largest
    w0 = jnp.minimum(jnp.minimum(e0, e1), e2)            # smallest
    w1 = e0 + e1 + e2 - w2 - w0                          # middle
    is0 = (e0 >= e1) & (e0 >= e2)
    is1 = jnp.logical_not(is0) & (e1 >= e2)

    def pick(row):
        return jnp.where(is0, V[row][0], jnp.where(is1, V[row][1], V[row][2]))

    return w1, w2, pick(0), pick(1), pick(2)


# ---------------------------------------------------------------------------
# Fused kernel: moments + 3x3 eigensolve + orientation score, one pass over HBM.
# plane_ref layout: [K*M voxel slots (sublanes; x|y|z(|value) stacked), TC clusters (lanes)].
# ---------------------------------------------------------------------------
def _make_fused_kernel(M, TC, add_value):
    def kernel(cnt_ref, plane_ref, out_ref):
        n_i = cnt_ref[...]                               # [1, TC] int32 true counts
        n = n_i.astype(jnp.float32)

        x = plane_ref[0:M, :]
        y = plane_ref[M:2 * M, :]
        z = plane_ref[2 * M:3 * M, :]

        # Shift by the first voxel.  Padded idx slots point at it too, so the
        # shifted planes are exactly zero on padding -> no mask multiplies here.
        rx = x[0:1, :]
        ry = y[0:1, :]
        rz = z[0:1, :]
        dx = x - rx
        dy = y - ry
        dz = z - rz

        def rsum(a):
            return jnp.sum(a, axis=0, keepdims=True)     # [1, TC]

        n_safe = jnp.maximum(n, 1.0)
        inv_n = pl.reciprocal(n_safe)                    # 1 reciprocal + 3 multiplies
        sx, sy, sz = rsum(dx), rsum(dy), rsum(dz)
        mx, my, mz = sx * inv_n, sy * inv_n, sz * inv_n
        cx, cy, cz = rx + mx, ry + my, rz + mz           # absolute centers

        sxx, sxy, sxz = rsum(dx * dx), rsum(dx * dy), rsum(dx * dz)
        syy, syz, szz = rsum(dy * dy), rsum(dy * dz), rsum(dz * dz)

        axx = sxx - n * mx * mx
        axy = sxy - n * mx * my
        axz = sxz - n * mx * mz
        ayy = syy - n * my * my
        ayz = syz - n * my * mz
        azz = szz - n * mz * mz

        w1, w2, v0x, v0y, v0z = _eigh3x3(axx, axy, axz, ayy, ayz, azz)

        # Orientation score (principal-axis sign fix): ||p||^2 = ||e||^2 - x0^2.
        iota = lax.broadcasted_iota(jnp.int32, (M, TC), 0)
        mask = jnp.where(iota < n_i, 1.0, 0.0)           # only place the mask is used
        ex = dx - mx
        ey = dy - my
        ez = dz - mz
        x0 = ex * v0x + ey * v0y + ez * v0z
        e2 = ex * ex + ey * ey + ez * ez
        perp = jnp.sqrt(jnp.maximum(e2 - x0 * x0, 0.0))
        sc = rsum(mask * (x0 * perp))

        if add_value:
            v = plane_ref[3 * M:4 * M, :]
            vf = v[0:1, :]
            dv = v - vf                                  # exactly 0 on padded slots
            sv = rsum(dv)                                # moments about first value
            svv = rsum(dv * dv)
        else:
            sv = jnp.zeros_like(n)
            svv = jnp.zeros_like(n)

        pad = jnp.zeros((OUT_W - _N_STATS, TC), jnp.float32)
        # Single unmasked full-block store (no per-row vst.msk).
        out_ref[...] = jnp.concatenate(
            [n, cx, cy, cz, axx, axy, axz, ayy, ayz, azz,
             w1, w2, v0x, v0y, v0z, sc, sv, svv, pad], axis=0)

    return kernel


def _fused_call(cnt, planes, M, Cp, TC, K, add_value, vmem_limit):
    return pl.pallas_call(
        _make_fused_kernel(M, TC, add_value),
        out_shape=jax.ShapeDtypeStruct((OUT_W, Cp), jnp.float32),
        grid=(Cp // TC,),
        in_specs=[pl.BlockSpec((1, TC), lambda i: (0, i)),
                  pl.BlockSpec((K * M, TC), lambda i: (0, i))],
        out_specs=pl.BlockSpec((OUT_W, TC), lambda i: (0, i)),
        compiler_params=pltpu.CompilerParams(
            dimension_semantics=("parallel",),
            vmem_limit_bytes=vmem_limit),
    )(cnt, planes)


# ---------------------------------------------------------------------------
# Wrapper: ClustGeoNodeEncoder.forward (torch branch semantics)
# ---------------------------------------------------------------------------
def clust_geo_node_encoder(data, clusts, add_value=False, add_shape=False):
    """data: [N, 6] f32 (batch, x, y, z, value, shape); clusts: list of int index arrays."""
    C = len(clusts)
    lens = np.array([len(c) for c in clusts], dtype=np.int64)
    maxlen = int(lens.max()) if C else 1
    M = max(128, _next_pow2(maxlen))              # bucketed -> bounded recompiles
    # TODO(synk): for very large clusters (M >= ~4-8K) add an inner 'arbitrary'
    # M-chunk grid axis with VMEM scratch accumulators (and a second sc pass)
    # instead of a single full-M block; required to fit v7x's 64 MiB VMEM.
    K = 4 if add_value else 3
    Cp, TC, vmem_limit = _pick_tile(M, C, K)

    data = jnp.asarray(data)
    N = int(data.shape[0])
    vox = data[:, 1:4].astype(jnp.float32)
    vals = data[:, 4].astype(jnp.float32)

    # Dense padded index table [Cp, M]; padded slots = cluster's FIRST voxel index
    # (so shifted planes are exactly 0 on padding).  Built with vectorized numpy.
    idx = np.zeros((Cp, M), dtype=np.int32)
    firsts = np.zeros((C,), dtype=np.int32)
    if C:
        flat = np.concatenate([np.asarray(c).ravel() for c in clusts]).astype(np.int64)
        offs = np.cumsum(lens) - lens
        firsts = flat[offs].astype(np.int32)
        idx[:C, :] = firsts[:, None]
        rows = np.repeat(np.arange(C), lens)
        cols = np.arange(int(lens.sum()), dtype=np.int64) - np.repeat(offs, lens)
        idx[rows, cols] = flat

    # ONE consolidated gather: flattened [K*N] source + stacked [K*M, Cp] indices,
    # producing a single slab already in kernel layout.
    idx_all = np.concatenate([idx.T + k * N for k in range(K)], axis=0).astype(np.int32)
    src_list = [vox[:, 0], vox[:, 1], vox[:, 2]] + ([vals] if add_value else [])
    src_flat = jnp.concatenate(src_list, axis=0)                     # [K*N]
    planes = jnp.take(src_flat, jnp.asarray(idx_all), axis=0)        # [K*M, Cp] f32

    cnt_np = np.zeros((1, Cp), dtype=np.int32)
    cnt_np[0, :C] = lens
    cnt = jnp.asarray(cnt_np)

    stats = _fused_call(cnt, planes, M, Cp, TC, K, add_value, vmem_limit)  # [OUT_W, Cp]
    S = stats[:, :C].T                                                     # [C, OUT_W]

    n = S[:, 0]
    center = S[:, 1:4]
    axx, axy, axz = S[:, 4], S[:, 5], S[:, 6]
    ayy, ayz, azz = S[:, 7], S[:, 8], S[:, 9]
    w1, w2 = S[:, 10], S[:, 11]
    v0 = S[:, 12:15]
    sc = S[:, 15]

    valid = n >= 2.0
    w2_safe = jnp.where(w2 != 0.0, w2, 1.0)
    dirwt = 1.0 - w1 / w2_safe
    B = jnp.stack([axx, axy, axz, axy, ayy, ayz, axz, ayz, azz], axis=-1) / w2_safe[:, None]
    v0 = jnp.where((sc < 0.0)[:, None], -v0, v0) * dirwt[:, None]

    feats_main = jnp.concatenate([center, B, v0, n[:, None]], axis=1)        # [C, 16]

    first_idx = jnp.asarray(firsts)
    first_vox = vox[first_idx]
    feats_small = jnp.concatenate(
        [first_vox, jnp.zeros((C, 12), jnp.float32), n[:, None]], axis=1)
    feats = jnp.where(valid[:, None], feats_main, feats_small)

    if add_value:
        sv, svv = S[:, 16], S[:, 17]                     # moments about the first value
        first_val = vals[first_idx]
        n_safe = jnp.maximum(n, 1.0)
        mean_shift = sv / n_safe
        mean_v = first_val + mean_shift
        var_v = (svv - n * mean_shift * mean_shift) / jnp.maximum(n - 1.0, 1.0)  # unbiased
        std_v = jnp.sqrt(jnp.maximum(var_v, 0.0))
        vmain = jnp.stack([mean_v, std_v], axis=-1)
        vsmall = jnp.stack([first_val, jnp.zeros_like(first_val)], axis=-1)
        feats = jnp.concatenate([feats, jnp.where(valid[:, None], vmain, vsmall)], axis=1)

    if add_shape:
        # TODO(synk): per-cluster semantic-type mode (torch .mode()) needs a per-cluster
        # bincount/argmax; not implemented as a Pallas reduction here.
        pass

    return feats


# ---------------------------------------------------------------------------
# Pure numpy reference mirroring the PyTorch forward
# ---------------------------------------------------------------------------
def reference(data, clusts, add_value=False):
    data = np.asarray(data)
    voxels = data[:, 1:4].astype(np.float32)
    values = data[:, 4].astype(np.float32)
    feats = []
    for c in clusts:
        c = np.asarray(c)
        x = voxels[c]
        size = np.array([len(c)], dtype=np.float32)
        if len(c) < 2:
            f = np.concatenate([x.flatten(), np.zeros(12, np.float32), size])
            if add_value:
                f = np.concatenate([f, np.array([values[c[0]], 0.0], np.float32)])
            feats.append(f.astype(np.float32))
            continue
        center = x.mean(axis=0)
        xc = x - center
        A = xc.T @ xc
        w, v = np.linalg.eigh(A)
        dirwt = 1.0 - w[1] / w[2]
        B = A / w[2]
        v0 = v[:, 2]
        x0 = xc @ v0
        xp0 = xc - np.outer(x0, v0)
        np0 = np.linalg.norm(xp0, axis=1)
        scv = float(np.dot(x0, np0))
        if scv < 0:
            v0 = -v0
        v0 = dirwt * v0
        f = np.concatenate([center, B.flatten(), v0, size])
        if add_value:
            vv = values[c]
            f = np.concatenate([f, np.array([vv.mean(), vv.std(ddof=1)], np.float32)])
        feats.append(f.astype(np.float32))
    return np.stack(feats, axis=0)


if __name__ == "__main__":
    key = jax.random.PRNGKey(0)
    k1, k2, k3 = jax.random.split(key, 3)
    N = 200
    coords = jax.random.uniform(k1, (N, 3), jnp.float32, 0.0, 32.0)
    values = jax.random.uniform(k2, (N,), jnp.float32, 0.1, 5.0)
    shapes = jax.random.randint(k3, (N,), 0, 5).astype(jnp.float32)
    batch = jnp.zeros((N, 1), jnp.float32)
    data = jnp.concatenate([batch, coords, values[:, None], shapes[:, None]], axis=1)

    # Test 1: 6 ragged clusters incl. a single-voxel cluster (small branch), 1 grid step.
    sizes = [1, 5, 20, 37, 50, 87]
    clusts, start = [], 0
    for s in sizes:
        clusts.append(np.arange(start, start + s, dtype=np.int32))
        start += s

    feats = jax.block_until_ready(clust_geo_node_encoder(data, clusts))
    ref = reference(np.asarray(data), clusts)
    assert feats.shape == ref.shape == (len(clusts), 16), (feats.shape, ref.shape)
    np.testing.assert_allclose(np.asarray(feats), ref, rtol=5e-3, atol=5e-3)

    # Test 1b: add_value path (mean / unbiased std of voxel values).
    feats_v = jax.block_until_ready(clust_geo_node_encoder(data, clusts, add_value=True))
    ref_v = reference(np.asarray(data), clusts, add_value=True)
    assert feats_v.shape == ref_v.shape == (len(clusts), 18)
    np.testing.assert_allclose(np.asarray(feats_v), ref_v, rtol=5e-3, atol=5e-3)

    # Test 2: many clusters -> multi-step grid (Cp=256, TC=128, 2 "parallel" steps).
    clusts2 = [((7 * i + 13 * np.arange(5)) % N).astype(np.int32) for i in range(150)]
    feats2 = jax.block_until_ready(clust_geo_node_encoder(data, clusts2))
    ref2 = reference(np.asarray(data), clusts2)
    assert feats2.shape == ref2.shape == (150, 16)
    np.testing.assert_allclose(np.asarray(feats2), ref2, rtol=5e-3, atol=5e-3)

    print("KERNEL_OK")
</pallas_src>

<mosaic_0001>
module attributes {stable_mosaic.version = 11 : i64} {
  func.func @kernel(%arg0: i32, %arg1: memref<1x128xi32, #tpu.memory_space<vmem>>, %arg2: memref<384x128xf32, #tpu.memory_space<vmem>>, %arg3: memref<24x128xf32, #tpu.memory_space<vmem>>) attributes {dimension_semantics = [#tpu.dimension_semantics<parallel>], iteration_bounds = array<i64: 1>, scalar_prefetch = 0 : i64, scratch_operands = 0 : i64, tpu.core_type = #tpu.core_type<tc>, window_params = [{transform_indices = @transform_0, window_bounds = array<i64: 1, 128>}, {transform_indices = @transform_1, window_bounds = array<i64: 384, 128>}, {transform_indices = @transform_2, window_bounds = array<i64: 24, 128>}]} {
    %c0 = arith.constant 0 : index
    %c0_0 = arith.constant 0 : index
    %0 = vector.load %arg1[%c0, %c0_0] : memref<1x128xi32, #tpu.memory_space<vmem>>, vector<1x128xi32>
    %1 = arith.sitofp %0 : vector<1x128xi32> to vector<1x128xf32>
    %c0_1 = arith.constant 0 : index
    %c0_2 = arith.constant 0 : index
    %2 = vector.load %arg2[%c0_1, %c0_2] : memref<384x128xf32, #tpu.memory_space<vmem>>, vector<128x128xf32>
    %c128 = arith.constant 128 : index
    %c0_3 = arith.constant 0 : index
    %3 = vector.load %arg2[%c128, %c0_3] : memref<384x128xf32, #tpu.memory_space<vmem>>, vector<128x128xf32>
    %c256 = arith.constant 256 : index
    %c0_4 = arith.constant 0 : index
    %4 = vector.load %arg2[%c256, %c0_4] : memref<384x128xf32, #tpu.memory_space<vmem>>, vector<128x128xf32>
    %5 = vector.extract_strided_slice %2 {offsets = [0, 0], sizes = [1, 128], strides = [1, 1]} : vector<128x128xf32> to vector<1x128xf32>
    %6 = vector.extract_strided_slice %3 {offsets = [0, 0], sizes = [1, 128], strides = [1, 1]} : vector<128x128xf32> to vector<1x128xf32>
    %7 = vector.extract_strided_slice %4 {offsets = [0, 0], sizes = [1, 128], strides = [1, 1]} : vector<128x128xf32> to vector<1x128xf32>
    %8 = vector.broadcast %5 : vector<1x128xf32> to vector<128x128xf32>
    %9 = arith.subf %2, %8 : vector<128x128xf32>
    %10 = vector.broadcast %6 : vector<1x128xf32> to vector<128x128xf32>
    %11 = arith.subf %3, %10 : vector<128x128xf32>
    %12 = vector.broadcast %7 : vector<1x128xf32> to vector<128x128xf32>
    %13 = arith.subf %4, %12 : vector<128x128xf32>
    %cst = arith.constant 1.000000e+00 : f32
    %14 = vector.broadcast %cst : f32 to vector<1x128xf32>
    %15 = arith.maximumf %1, %14 : vector<1x128xf32>
    %16 = tpu.reciprocal %15 : vector<1x128xf32> -> vector<1x128xf32>
    %cst_5 = arith.constant dense<0.000000e+00> : vector<128xf32>
    %17 = vector.multi_reduction <add>, %9, %cst_5 [0] : vector<128x128xf32> to vector<128xf32>
    %18 = vector.shape_cast %17 : vector<128xf32> to vector<1x128xf32>
    %cst_6 = arith.constant dense<0.000000e+00> : vector<128xf32>
    %19 = vector.multi_reduction <add>, %11, %cst_6 [0] : vector<128x128xf32> to vector<128xf32>
    %20 = vector.shape_cast %19 : vector<128xf32> to vector<1x128xf32>
    %cst_7 = arith.constant dense<0.000000e+00> : vector<128xf32>
    %21 = vector.multi_reduction <add>, %13, %cst_7 [0] : vector<128x128xf32> to vector<128xf32>
    %22 = vector.shape_cast %21 : vector<128xf32> to vector<1x128xf32>
    %23 = arith.mulf %18, %16 : vector<1x128xf32>
    %24 = arith.mulf %20, %16 : vector<1x128xf32>
    %25 = arith.mulf %22, %16 : vector<1x128xf32>
    %26 = arith.addf %5, %23 : vector<1x128xf32>
    %27 = arith.addf %6, %24 : vector<1x128xf32>
    %28 = arith.addf %7, %25 : vector<1x128xf32>
    %29 = arith.mulf %9, %9 : vector<128x128xf32>
    %cst_8 = arith.constant dense<0.000000e+00> : vector<128xf32>
    %30 = vector.multi_reduction <add>, %29, %cst_8 [0] : vector<128x128xf32> to vector<128xf32>
    %31 = vector.shape_cast %30 : vector<128xf32> to vector<1x128xf32>
    %32 = arith.mulf %9, %11 : vector<128x128xf32>
    %cst_9 = arith.constant dense<0.000000e+00> : vector<128xf32>
    %33 = vector.multi_reduction <add>, %32, %cst_9 [0] : vector<128x128xf32> to vector<128xf32>
    %34 = vector.shape_cast %33 : vector<128xf32> to vector<1x128xf32>
    %35 = arith.mulf %9, %13 : vector<128x128xf32>
    %cst_10 = arith.constant dense<0.000000e+00> : vector<128xf32>
    %36 = vector.multi_reduction <add>, %35, %cst_10 [0] : vector<128x128xf32> to vector<128xf32>
    %37 = vector.shape_cast %36 : vector<128xf32> to vector<1x128xf32>
    %38 = arith.mulf %11, %11 : vector<128x128xf32>
    %cst_11 = arith.constant dense<0.000000e+00> : vector<128xf32>
    %39 = vector.multi_reduction <add>, %38, %cst_11 [0] : vector<128x128xf32> to vector<128xf32>
    %40 = vector.shape_cast %39 : vector<128xf32> to vector<1x128xf32>
    %41 = arith.mulf %11, %13 : vector<128x128xf32>
    %cst_12 = arith.constant dense<0.000000e+00> : vector<128xf32>
    %42 = vector.multi_reduction <add>, %41, %cst_12 [0] : vector<128x128xf32> to vector<128xf32>
    %43 = vector.shape_cast %42 : vector<128xf32> to vector<1x128xf32>
    %44 = arith.mulf %13, %13 : vector<128x128xf32>
    %cst_13 = arith.constant dense<0.000000e+00> : vector<128xf32>
    %45 = vector.multi_reduction <add>, %44, %cst_13 [0] : vector<128x128xf32> to vector<128xf32>
    %46 = vector.shape_cast %45 : vector<128xf32> to vector<1x128xf32>
    %47 = arith.mulf %1, %23 : vector<1x128xf32>
    %48 = arith.mulf %47, %23 : vector<1x128xf32>
    %49 = arith.subf %31, %48 : vector<1x128xf32>
    %50 = arith.mulf %1, %23 : vector<1x128xf32>
    %51 = arith.mulf %50, %24 : vector<1x128xf32>
    %52 = arith.subf %34, %51 : vector<1x128xf32>
    %53 = arith.mulf %1, %23 : vector<1x128xf32>
    %54 = arith.mulf %53, %25 : vector<1x128xf32>
    %55 = arith.subf %37, %54 : vector<1x128xf32>
    %56 = arith.mulf %1, %24 : vector<1x128xf32>
    %57 = arith.mulf %56, %24 : vector<1x128xf32>
    %58 = arith.subf %40, %57 : vector<1x128xf32>
    %59 = arith.mulf %1, %24 : vector<1x128xf32>
    %60 = arith.mulf %59, %25 : vector<1x128xf32>
    %61 = arith.subf %43, %60 : vector<1x128xf32>
    %62 = arith.mulf %1, %25 : vector<1x128xf32>
    %63 = arith.mulf %62, %25 : vector<1x128xf32>
    %64 = arith.subf %46, %63 : vector<1x128xf32>
    %cst_14 = arith.constant 1.000000e+00 : f32
    %65 = vector.broadcast %cst_14 : f32 to vector<1x128xf32>
    %cst_15 = arith.constant 0.000000e+00 : f32
    %66 = vector.broadcast %cst_15 : f32 to vector<1x128xf32>
    %67 = math.absf %52 : vector<1x128xf32>
    %cst_16 = arith.constant 1.000000e-30 : f32
    %68 = vector.broadcast %cst_16 : f32 to vector<1x128xf32>
    %69 = arith.cmpf ogt, %67, %68 : vector<1x128xf32>
    %cst_17 = arith.constant 1.000000e+00 : f32
    %70 = vector.broadcast %cst_17 : f32 to vector<1x128xf32>
    %71 = arith.select %69, %52, %70 : vector<1x128xi1>, vector<1x128xf32>
    %72 = arith.subf %58, %49 : vector<1x128xf32>
    %73 = tpu.reciprocal %71 {approx = true} : vector<1x128xf32> -> vector<1x128xf32>
    %cst_18 = arith.constant 5.000000e-01 : f32
    %74 = vector.broadcast %cst_18 : f32 to vector<1x128xf32>
    %75 = arith.mulf %74, %73 : vector<1x128xf32>
    %76 = arith.mulf %72, %75 : vector<1x128xf32>
    %cst_19 = arith.constant -9.99999984E+17 : f32
    %cst_20 = arith.constant 9.99999984E+17 : f32
    %77 = vector.broadcast %cst_19 : f32 to vector<1x128xf32>
    %78 = arith.maximumf %77, %76 : vector<1x128xf32>
    %79 = vector.broadcast %cst_20 : f32 to vector<1x128xf32>
    %80 = arith.minimumf %79, %78 : vector<1x128xf32>
    %cst_21 = arith.constant 0.000000e+00 : f32
    %81 = vector.broadcast %cst_21 : f32 to vector<1x128xf32>
    %82 = arith.cmpf oge, %80, %81 : vector<1x128xf32>
    %cst_22 = arith.constant 1.000000e+00 : f32
    %cst_23 = arith.constant -1.000000e+00 : f32
    %83 = vector.broadcast %cst_22 : f32 to vector<1x128xf32>
    %84 = vector.broadcast %cst_23 : f32 to vector<1x128xf32>
    %85 = arith.select %82, %83, %84 : vector<1x128xi1>, vector<1x128xf32>
    %86 = math.absf %80 : vector<1x128xf32>
    %87 = arith.mulf %80, %80 : vector<1x128xf32>
    %cst_24 = arith.constant 1.000000e+00 : f32
    %88 = vector.broadcast %cst_24 : f32 to vector<1x128xf32>
    %89 = arith.addf %87, %88 : vector<1x128xf32>
    %90 = math.sqrt %89 : vector<1x128xf32>
    %91 = arith.addf %86, %90 : vector<1x128xf32>
    %92 = tpu.reciprocal %91 {approx = true} : vector<1x128xf32> -> vector<1x128xf32>
    %93 = arith.mulf %85, %92 : vector<1x128xf32>
    %cst_25 = arith.constant 0.000000e+00 : f32
    %94 = vector.broadcast %cst_25 : f32 to vector<1x128xf32>
    %95 = arith.select %69, %93, %94 : vector<1x128xi1>, vector<1x128xf32>
    %96 = arith.mulf %95, %95 : vector<1x128xf32>
    %cst_26 = arith.constant 1.000000e+00 : f32
    %97 = vector.broadcast %cst_26 : f32 to vector<1x128xf32>
    %98 = arith.addf %96, %97 : vector<1x128xf32>
    %99 = math.rsqrt %98 : vector<1x128xf32>
    %100 = arith.mulf %95, %99 : vector<1x128xf32>
    %101 = arith.mulf %95, %52 : vector<1x128xf32>
    %102 = arith.subf %49, %101 : vector<1x128xf32>
    %103 = arith.mulf %95, %52 : vector<1x128xf32>
    %104 = arith.addf %58, %103 : vector<1x128xf32>
    %cst_27 = arith.constant 0.000000e+00 : f32
    %105 = vector.broadcast %cst_27 : f32 to vector<1x128xf32>
    %106 = arith.mulf %99, %55 : vector<1x128xf32>
    %107 = arith.mulf %100, %61 : vector<1x128xf32>
    %108 = arith.subf %106, %107 : vector<1x128xf32>
    %109 = arith.mulf %100, %55 : vector<1x128xf32>
    %110 = arith.mulf %99, %61 : vector<1x128xf32>
    %111 = arith.addf %109, %110 : vector<1x128xf32>
    %112 = arith.mulf %99, %65 : vector<1x128xf32>
    %113 = arith.mulf %100, %66 : vector<1x128xf32>
    %114 = arith.subf %112, %113 : vector<1x128xf32>
    %115 = arith.mulf %100, %65 : vector<1x128xf32>
    %116 = arith.mulf %99, %66 : vector<1x128xf32>
    %117 = arith.addf %115, %116 : vector<1x128xf32>
    %118 = arith.mulf %99, %66 : vector<1x128xf32>
    %119 = arith.mulf %100, %65 : vector<1x128xf32>
    %120 = arith.subf %118, %119 : vector<1x128xf32>
    %121 = arith.mulf %100, %66 : vector<1x128xf32>
    %122 = arith.mulf %99, %65 : vector<1x128xf32>
    %123 = arith.addf %121, %122 : vector<1x128xf32>
    %124 = arith.mulf %99, %66 : vector<1x128xf32>
    %125 = arith.mulf %100, %66 : vector<1x128xf32>
    %126 = arith.subf %124, %125 : vector<1x128xf32>
    %127 = arith.mulf %100, %66 : vector<1x128xf32>
    %128 = arith.mulf %99, %66 : vector<1x128xf32>
    %129 = arith.addf %127, %128 : vector<1x128xf32>
    %130 = math.absf %108 : vector<1x128xf32>
    %cst_28 = arith.constant 1.000000e-30 : f32
    %131 = vector.broadcast %cst_28 : f32 to vector<1x128xf32>
    %132 = arith.cmpf ogt, %130, %131 : vector<1x128xf32>
    %cst_29 = arith.constant 1.000000e+00 : f32
    %133 = vector.broadcast %cst_29 : f32 to vector<1x128xf32>
    %134 = arith.select %132, %108, %133 : vector<1x128xi1>, vector<1x128xf32>
    %135 = arith.subf %64, %102 : vector<1x128xf32>
    %136 = tpu.reciprocal %134 {approx = true} : vector<1x128xf32> -> vector<1x128xf32>
    %cst_30 = arith.constant 5.000000e-01 : f32
    %137 = vector.broadcast %cst_30 : f32 to vector<1x128xf32>
    %138 = arith.mulf %137, %136 : vector<1x128xf32>
    %139 = arith.mulf %135, %138 : vector<1x128xf32>
    %cst_31 = arith.constant -9.99999984E+17 : f32
    %cst_32 = arith.constant 9.99999984E+17 : f32
    %140 = vector.broadcast %cst_31 : f32 to vector<1x128xf32>
    %141 = arith.maximumf %140, %139 : vector<1x128xf32>
    %142 = vector.broadcast %cst_32 : f32 to vector<1x128xf32>
    %143 = arith.minimumf %142, %141 : vector<1x128xf32>
    %cst_33 = arith.constant 0.000000e+00 : f32
    %144 = vector.broadcast %cst_33 : f32 to vector<1x128xf32>
    %145 = arith.cmpf oge, %143, %144 : vector<1x128xf32>
    %cst_34 = arith.constant 1.000000e+00 : f32
    %cst_35 = arith.constant -1.000000e+00 : f32
    %146 = vector.broadcast %cst_34 : f32 to vector<1x128xf32>
    %147 = vector.broadcast %cst_35 : f32 to vector<1x128xf32>
    %148 = arith.select %145, %146, %147 : vector<1x128xi1>, vector<1x128xf32>
    %149 = math.absf %143 : vector<1x128xf32>
    %150 = arith.mulf %143, %143 : vector<1x128xf32>
    %cst_36 = arith.constant 1.000000e+00 : f32
    %151 = vector.broadcast %cst_36 : f32 to vector<1x128xf32>
    %152 = arith.addf %150, %151 : vector<1x128xf32>
    %153 = math.sqrt %152 : vector<1x128xf32>
    %154 = arith.addf %149, %153 : vector<1x128xf32>
    %155 = tpu.reciprocal %154 {approx = true} : vector<1x128xf32> -> vector<1x128xf32>
    %156 = arith.mulf %148, %155 : vector<1x128xf32>
    %cst_37 = arith.constant 0.000000e+00 : f32
    %157 = vector.broadcast %cst_37 : f32 to vector<1x128xf32>
    %158 = arith.select %132, %156, %157 : vector<1x128xi1>, vector<1x128xf32>
    %159 = arith.mulf %158, %158 : vector<1x128xf32>
    %cst_38 = arith.constant 1.000000e+00 : f32
    %160 = vector.broadcast %cst_38 : f32 to vector<1x128xf32>
    %161 = arith.addf %159, %160 : vector<1x128xf32>
    %162 = math.rsqrt %161 : vector<1x128xf32>
    %163 = arith.mulf %158, %162 : vector<1x128xf32>
    %164 = arith.mulf %158, %108 : vector<1x128xf32>
    %165 = arith.subf %102, %164 : vector<1x128xf32>
    %166 = arith.mulf %158, %108 : vector<1x128xf32>
    %167 = arith.addf %64, %166 : vector<1x128xf32>
    %cst_39 = arith.constant 0.000000e+00 : f32
    %168 = vector.broadcast %cst_39 : f32 to vector<1x128xf32>
    %169 = arith.mulf %162, %105 : vector<1x128xf32>
    %170 = arith.mulf %163, %111 : vector<1x128xf32>
    %171 = arith.subf %169, %170 : vector<1x128xf32>
    %172 = arith.mulf %163, %105 : vector<1x128xf32>
    %173 = arith.mulf %162, %111 : vector<1x128xf32>
    %174 = arith.addf %172, %173 : vector<1x128xf32>
    %175 = arith.mulf %162, %114 : vector<1x128xf32>
    %176 = arith.mulf %163, %66 : vector<1x128xf32>
    %177 = arith.subf %175, %176 : vector<1x128xf32>
    %178 = arith.mulf %163, %114 : vector<1x128xf32>
    %179 = arith.mulf %162, %66 : vector<1x128xf32>
    %180 = arith.addf %178, %179 : vector<1x128xf32>
    %181 = arith.mulf %162, %120 : vector<1x128xf32>
    %182 = arith.mulf %163, %66 : vector<1x128xf32>
    %183 = arith.subf %181, %182 : vector<1x128xf32>
    %184 = arith.mulf %163, %120 : vector<1x128xf32>
    %185 = arith.mulf %162, %66 : vector<1x128xf32>
    %186 = arith.addf %184, %185 : vector<1x128xf32>
    %187 = arith.mulf %162, %126 : vector<1x128xf32>
    %188 = arith.mulf %163, %65 : vector<1x128xf32>
    %189 = arith.subf %187, %188 : vector<1x128xf32>
    %190 = arith.mulf %163, %126 : vector<1x128xf32>
    %191 = arith.mulf %162, %65 : vector<1x128xf32>
    %192 = arith.addf %190, %191 : vector<1x128xf32>
    %193 = math.absf %174 : vector<1x128xf32>
    %cst_40 = arith.constant 1.000000e-30 : f32
    %194 = vector.broadcast %cst_40 : f32 to vector<1x128xf32>
    %195 = arith.cmpf ogt, %193, %194 : vector<1x128xf32>
    %cst_41 = arith.constant 1.000000e+00 : f32
    %196 = vector.broadcast %cst_41 : f32 to vector<1x128xf32>
    %197 = arith.select %195, %174, %196 : vector<1x128xi1>, vector<1x128xf32>
    %198 = arith.subf %167, %104 : vector<1x128xf32>
    %199 = tpu.reciprocal %197 {approx = true} : vector<1x128xf32> -> vector<1x128xf32>
    %cst_42 = arith.constant 5.000000e-01 : f32
    %200 = vector.broadcast %cst_42 : f32 to vector<1x128xf32>
    %201 = arith.mulf %200, %199 : vector<1x128xf32>
    %202 = arith.mulf %198, %201 : vector<1x128xf32>
    %cst_43 = arith.constant -9.99999984E+17 : f32
    %cst_44 = arith.constant 9.99999984E+17 : f32
    %203 = vector.broadcast %cst_43 : f32 to vector<1x128xf32>
    %204 = arith.maximumf %203, %202 : vector<1x128xf32>
    %205 = vector.broadcast %cst_44 : f32 to vector<1x128xf32>
    %206 = arith.minimumf %205, %204 : vector<1x128xf32>
    %cst_45 = arith.constant 0.000000e+00 : f32
    %207 = vector.broadcast %cst_45 : f32 to vector<1x128xf32>
    %208 = arith.cmpf oge, %206, %207 : vector<1x128xf32>
    %cst_46 = arith.constant 1.000000e+00 : f32
    %cst_47 = arith.constant -1.000000e+00 : f32
    %209 = vector.broadcast %cst_46 : f32 to vector<1x128xf32>
    %210 = vector.broadcast %cst_47 : f32 to vector<1x128xf32>
    %211 = arith.select %208, %209, %210 : vector<1x128xi1>, vector<1x128xf32>
    %212 = math.absf %206 : vector<1x128xf32>
    %213 = arith.mulf %206, %206 : vector<1x128xf32>
    %cst_48 = arith.constant 1.000000e+00 : f32
    %214 = vector.broadcast %cst_48 : f32 to vector<1x128xf32>
    %215 = arith.addf %213, %214 : vector<1x128xf32>
    %216 = math.sqrt %215 : vector<1x128xf32>
    %217 = arith.addf %212, %216 : vector<1x128xf32>
    %218 = tpu.reciprocal %217 {approx = true} : vector<1x128xf32> -> vector<1x128xf32>
    %219 = arith.mulf %211, %218 : vector<1x128xf32>
    %cst_49 = arith.constant 0.000000e+00 : f32
    %220 = vector.broadcast %cst_49 : f32 to vector<1x128xf32>
    %221 = arith.select %195, %219, %220 : vector<1x128xi1>, vector<1x128xf32>
    %222 = arith.mulf %221, %221 : vector<1x128xf32>
    %cst_50 = arith.constant 1.000000e+00 : f32
    %223 = vector.broadcast %cst_50 : f32 to vector<1x128xf32>
    %224 = arith.addf %222, %223 : vector<1x128xf32>
    %225 = math.rsqrt %224 : vector<1x128xf32>
    %226 = arith.mulf %221, %225 : vector<1x128xf32>
    %227 = arith.mulf %221, %174 : vector<1x128xf32>
    %228 = arith.subf %104, %227 : vector<1x128xf32>
    %229 = arith.mulf %221, %174 : vector<1x128xf32>
    %230 = arith.addf %167, %229 : vector<1x128xf32>
    %cst_51 = arith.constant 0.000000e+00 : f32
    %231 = vector.broadcast %cst_51 : f32 to vector<1x128xf32>
    %232 = arith.mulf %225, %171 : vector<1x128xf32>
    %233 = arith.mulf %226, %168 : vector<1x128xf32>
    %234 = arith.subf %232, %233 : vector<1x128xf32>
    %235 = arith.mulf %226, %171 : vector<1x128xf32>
    %236 = arith.mulf %225, %168 : vector<1x128xf32>
    %237 = arith.addf %235, %236 : vector<1x128xf32>
    %238 = arith.mulf %225, %117 : vector<1x128xf32>
    %239 = arith.mulf %226, %180 : vector<1x128xf32>
    %240 = arith.subf %238, %239 : vector<1x128xf32>
    %241 = arith.mulf %226, %117 : vector<1x128xf32>
    %242 = arith.mulf %225, %180 : vector<1x128xf32>
    %243 = arith.addf %241, %242 : vector<1x128xf32>
    %244 = arith.mulf %225, %123 : vector<1x128xf32>
    %245 = arith.mulf %226, %186 : vector<1x128xf32>
    %246 = arith.subf %244, %245 : vector<1x128xf32>
    %247 = arith.mulf %226, %123 : vector<1x128xf32>
    %248 = arith.mulf %225, %186 : vector<1x128xf32>
    %249 = arith.addf %247, %248 : vector<1x128xf32>
    %250 = arith.mulf %225, %129 : vector<1x128xf32>
    %251 = arith.mulf %226, %192 : vector<1x128xf32>
    %252 = arith.subf %250, %251 : vector<1x128xf32>
    %253 = arith.mulf %226, %129 : vector<1x128xf32>
    %254 = arith.mulf %225, %192 : vector<1x128xf32>
    %255 = arith.addf %253, %254 : vector<1x128xf32>
    %256 = math.absf %234 : vector<1x128xf32>
    %cst_52 = arith.constant 1.000000e-30 : f32
    %257 = vector.broadcast %cst_52 : f32 to vector<1x128xf32>
    %258 = arith.cmpf ogt, %256, %257 : vector<1x128xf32>
    %cst_53 = arith.constant 1.000000e+00 : f32
    %259 = vector.broadcast %cst_53 : f32 to vector<1x128xf32>
    %260 = arith.select %258, %234, %259 : vector<1x128xi1>, vector<1x128xf32>
    %261 = arith.subf %228, %165 : vector<1x128xf32>
    %262 = tpu.reciprocal %260 {approx = true} : vector<1x128xf32> -> vector<1x128xf32>
    %cst_54 = arith.constant 5.000000e-01 : f32
    %263 = vector.broadcast %cst_54 : f32 to vector<1x128xf32>
    %264 = arith.mulf %263, %262 : vector<1x128xf32>
    %265 = arith.mulf %261, %264 : vector<1x128xf32>
    %cst_55 = arith.constant -9.99999984E+17 : f32
    %cst_56 = arith.constant 9.99999984E+17 : f32
    %266 = vector.broadcast %cst_55 : f32 to vector<1x128xf32>
    %267 = arith.maximumf %266, %265 : vector<1x128xf32>
    %268 = vector.broadcast %cst_56 : f32 to vector<1x128xf32>
    %269 = arith.minimumf %268, %267 : vector<1x128xf32>
    %cst_57 = arith.constant 0.000000e+00 : f32
    %270 = vector.broadcast %cst_57 : f32 to vector<1x128xf32>
    %271 = arith.cmpf oge, %269, %270 : vector<1x128xf32>
    %cst_58 = arith.constant 1.000000e+00 : f32
    %cst_59 = arith.constant -1.000000e+00 : f32
    %272 = vector.broadcast %cst_58 : f32 to vector<1x128xf32>
    %273 = vector.broadcast %cst_59 : f32 to vector<1x128xf32>
    %274 = arith.select %271, %272, %273 : vector<1x128xi1>, vector<1x128xf32>
    %275 = math.absf %269 : vector<1x128xf32>
    %276 = arith.mulf %269, %269 : vector<1x128xf32>
    %cst_60 = arith.constant 1.000000e+00 : f32
    %277 = vector.broadcast %cst_60 : f32 to vector<1x128xf32>
    %278 = arith.addf %276, %277 : vector<1x128xf32>
    %279 = math.sqrt %278 : vector<1x128xf32>
    %280 = arith.addf %275, %279 : vector<1x128xf32>
    %281 = tpu.reciprocal %280 {approx = true} : vector<1x128xf32> -> vector<1x128xf32>
    %282 = arith.mulf %274, %281 : vector<1x128xf32>
    %cst_61 = arith.constant 0.000000e+00 : f32
    %283 = vector.broadcast %cst_61 : f32 to vector<1x128xf32>
    %284 = arith.select %258, %282, %283 : vector<1x128xi1>, vector<1x128xf32>
    %285 = arith.mulf %284, %284 : vector<1x128xf32>
    %cst_62 = arith.constant 1.000000e+00 : f32
    %286 = vector.broadcast %cst_62 : f32 to vector<1x128xf32>
    %287 = arith.addf %285, %286 : vector<1x128xf32>
    %288 = math.rsqrt %287 : vector<1x128xf32>
    %289 = arith.mulf %284, %288 : vector<1x128xf32>
    %290 = arith.mulf %284, %234 : vector<1x128xf32>
    %291 = arith.subf %165, %290 : vector<1x128xf32>
    %292 = arith.mulf %284, %234 : vector<1x128xf32>
    %293 = arith.addf %228, %292 : vector<1x128xf32>
    %cst_63 = arith.constant 0.000000e+00 : f32
    %294 = vector.broadcast %cst_63 : f32 to vector<1x128xf32>
    %295 = arith.mulf %288, %237 : vector<1x128xf32>
    %296 = arith.mulf %289, %231 : vector<1x128xf32>
    %297 = arith.subf %295, %296 : vector<1x128xf32>
    %298 = arith.mulf %289, %237 : vector<1x128xf32>
    %299 = arith.mulf %288, %231 : vector<1x128xf32>
    %300 = arith.addf %298, %299 : vector<1x128xf32>
    %301 = arith.mulf %288, %177 : vector<1x128xf32>
    %302 = arith.mulf %289, %240 : vector<1x128xf32>
    %303 = arith.subf %301, %302 : vector<1x128xf32>
    %304 = arith.mulf %289, %177 : vector<1x128xf32>
    %305 = arith.mulf %288, %240 : vector<1x128xf32>
    %306 = arith.addf %304, %305 : vector<1x128xf32>
    %307 = arith.mulf %288, %183 : vector<1x128xf32>
    %308 = arith.mulf %289, %246 : vector<1x128xf32>
    %309 = arith.subf %307, %308 : vector<1x128xf32>
    %310 = arith.mulf %289, %183 : vector<1x128xf32>
    %311 = arith.mulf %288, %246 : vector<1x128xf32>
    %312 = arith.addf %310, %311 : vector<1x128xf32>
    %313 = arith.mulf %288, %189 : vector<1x128xf32>
    %314 = arith.mulf %289, %252 : vector<1x128xf32>
    %315 = arith.subf %313, %314 : vector<1x128xf32>
    %316 = arith.mulf %289, %189 : vector<1x128xf32>
    %317 = arith.mulf %288, %252 : vector<1x128xf32>
    %318 = arith.addf %316, %317 : vector<1x128xf32>
    %319 = math.absf %297 : vector<1x128xf32>
    %cst_64 = arith.constant 1.000000e-30 : f32
    %320 = vector.broadcast %cst_64 : f32 to vector<1x128xf32>
    %321 = arith.cmpf ogt, %319, %320 : vector<1x128xf32>
    %cst_65 = arith.constant 1.000000e+00 : f32
    %322 = vector.broadcast %cst_65 : f32 to vector<1x128xf32>
    %323 = arith.select %321, %297, %322 : vector<1x128xi1>, vector<1x128xf32>
    %324 = arith.subf %230, %291 : vector<1x128xf32>
    %325 = tpu.reciprocal %323 {approx = true} : vector<1x128xf32> -> vector<1x128xf32>
    %cst_66 = arith.constant 5.000000e-01 : f32
    %326 = vector.broadcast %cst_66 : f32 to vector<1x128xf32>
    %327 = arith.mulf %326, %325 : vector<1x128xf32>
    %328 = arith.mulf %324, %327 : vector<1x128xf32>
    %cst_67 = arith.constant -9.99999984E+17 : f32
    %cst_68 = arith.constant 9.99999984E+17 : f32
    %329 = vector.broadcast %cst_67 : f32 to vector<1x128xf32>
    %330 = arith.maximumf %329, %328 : vector<1x128xf32>
    %331 = vector.broadcast %cst_68 : f32 to vector<1x128xf32>
    %332 = arith.minimumf %331, %330 : vector<1x128xf32>
    %cst_69 = arith.constant 0.000000e+00 : f32
    %333 = vector.broadcast %cst_69 : f32 to vector<1x128xf32>
    %334 = arith.cmpf oge, %332, %333 : vector<1x128xf32>
    %cst_70 = arith.constant 1.000000e+00 : f32
    %cst_71 = arith.constant -1.000000e+00 : f32
    %335 = vector.broadcast %cst_70 : f32 to vector<1x128xf32>
    %336 = vector.broadcast %cst_71 : f32 to vector<1x128xf32>
    %337 = arith.select %334, %335, %336 : vector<1x128xi1>, vector<1x128xf32>
    %338 = math.absf %332 : vector<1x128xf32>
    %339 = arith.mulf %332, %332 : vector<1x128xf32>
    %cst_72 = arith.constant 1.000000e+00 : f32
    %340 = vector.broadcast %cst_72 : f32 to vector<1x128xf32>
    %341 = arith.addf %339, %340 : vector<1x128xf32>
    %342 = math.sqrt %341 : vector<1x128xf32>
    %343 = arith.addf %338, %342 : vector<1x128xf32>
    %344 = tpu.reciprocal %343 {approx = true} : vector<1x128xf32> -> vector<1x128xf32>
    %345 = arith.mulf %337, %344 : vector<1x128xf32>
    %cst_73 = arith.constant 0.000000e+00 : f32
    %346 = vector.broadcast %cst_73 : f32 to vector<1x128xf32>
    %347 = arith.select %321, %345, %346 : vector<1x128xi1>, vector<1x128xf32>
    %348 = arith.mulf %347, %347 : vector<1x128xf32>
    %cst_74 = arith.constant 1.000000e+00 : f32
    %349 = vector.broadcast %cst_74 : f32 to vector<1x128xf32>
    %350 = arith.addf %348, %349 : vector<1x128xf32>
    %351 = math.rsqrt %350 : vector<1x128xf32>
    %352 = arith.mulf %347, %351 : vector<1x128xf32>
    %353 = arith.mulf %347, %297 : vector<1x128xf32>
    %354 = arith.subf %291, %353 : vector<1x128xf32>
    %355 = arith.mulf %347, %297 : vector<1x128xf32>
    %356 = arith.addf %230, %355 : vector<1x128xf32>
    %cst_75 = arith.constant 0.000000e+00 : f32
    %357 = vector.broadcast %cst_75 : f32 to vector<1x128xf32>
    %358 = arith.mulf %351, %294 : vector<1x128xf32>
    %359 = arith.mulf %352, %300 : vector<1x128xf32>
    %360 = arith.subf %358, %359 : vector<1x128xf32>
    %361 = arith.mulf %352, %294 : vector<1x128xf32>
    %362 = arith.mulf %351, %300 : vector<1x128xf32>
    %363 = arith.addf %361, %362 : vector<1x128xf32>
    %364 = arith.mulf %351, %303 : vector<1x128xf32>
    %365 = arith.mulf %352, %243 : vector<1x128xf32>
    %366 = arith.subf %364, %365 : vector<1x128xf32>
    %367 = arith.mulf %352, %303 : vector<1x128xf32>
    %368 = arith.mulf %351, %243 : vector<1x128xf32>
    %369 = arith.addf %367, %368 : vector<1x128xf32>
    %370 = arith.mulf %351, %309 : vector<1x128xf32>
    %371 = arith.mulf %352, %249 : vector<1x128xf32>
    %372 = arith.subf %370, %371 : vector<1x128xf32>
    %373 = arith.mulf %352, %309 : vector<1x128xf32>
    %374 = arith.mulf %351, %249 : vector<1x128xf32>
    %375 = arith.addf %373, %374 : vector<1x128xf32>
    %376 = arith.mulf %351, %315 : vector<1x128xf32>
    %377 = arith.mulf %352, %255 : vector<1x128xf32>
    %378 = arith.subf %376, %377 : vector<1x128xf32>
    %379 = arith.mulf %352, %315 : vector<1x128xf32>
    %380 = arith.mulf %351, %255 : vector<1x128xf32>
    %381 = arith.addf %379, %380 : vector<1x128xf32>
    %382 = math.absf %363 : vector<1x128xf32>
    %cst_76 = arith.constant 1.000000e-30 : f32
    %383 = vector.broadcast %cst_76 : f32 to vector<1x128xf32>
    %384 = arith.cmpf ogt, %382, %383 : vector<1x128xf32>
    %cst_77 = arith.constant 1.000000e+00 : f32
    %385 = vector.broadcast %cst_77 : f32 to vector<1x128xf32>
    %386 = arith.select %384, %363, %385 : vector<1x128xi1>, vector<1x128xf32>
    %387 = arith.subf %356, %293 : vector<1x128xf32>
    %388 = tpu.reciprocal %386 {approx = true} : vector<1x128xf32> -> vector<1x128xf32>
    %cst_78 = arith.constant 5.000000e-01 : f32
    %389 = vector.broadcast %cst_78 : f32 to vector<1x128xf32>
    %390 = arith.mulf %389, %388 : vector<1x128xf32>
    %391 = arith.mulf %387, %390 : vector<1x128xf32>
    %cst_79 = arith.constant -9.99999984E+17 : f32
    %cst_80 = arith.constant 9.99999984E+17 : f32
    %392 = vector.broadcast %cst_79 : f32 to vector<1x128xf32>
    %393 = arith.maximumf %392, %391 : vector<1x128xf32>
    %394 = vector.broadcast %cst_80 : f32 to vector<1x128xf32>
    %395 = arith.minimumf %394, %393 : vector<1x128xf32>
    %cst_81 = arith.constant 0.000000e+00 : f32
    %396 = vector.broadcast %cst_81 : f32 to vector<1x128xf32>
    %397 = arith.cmpf oge, %395, %396 : vector<1x128xf32>
    %cst_82 = arith.constant 1.000000e+00 : f32
    %cst_83 = arith.constant -1.000000e+00 : f32
    %398 = vector.broadcast %cst_82 : f32 to vector<1x128xf32>
    %399 = vector.broadcast %cst_83 : f32 to vector<1x128xf32>
    %400 = arith.select %397, %398, %399 : vector<1x128xi1>, vector<1x128xf32>
    %401 = math.absf %395 : vector<1x128xf32>
    %402 = arith.mulf %395, %395 : vector<1x128xf32>
    %cst_84 = arith.constant 1.000000e+00 : f32
    %403 = vector.broadcast %cst_84 : f32 to vector<1x128xf32>
    %404 = arith.addf %402, %403 : vector<1x128xf32>
    %405 = math.sqrt %404 : vector<1x128xf32>
    %406 = arith.addf %401, %405 : vector<1x128xf32>
    %407 = tpu.reciprocal %406 {approx = true} : vector<1x128xf32> -> vector<1x128xf32>
    %408 = arith.mulf %400, %407 : vector<1x128xf32>
    %cst_85 = arith.constant 0.000000e+00 : f32
    %409 = vector.broadcast %cst_85 : f32 to vector<1x128xf32>
    %410 = arith.select %384, %408, %409 : vector<1x128xi1>, vector<1x128xf32>
    %411 = arith.mulf %410, %410 : vector<1x128xf32>
    %cst_86 = arith.constant 1.000000e+00 : f32
    %412 = vector.broadcast %cst_86 : f32 to vector<1x128xf32>
    %413 = arith.addf %411, %412 : vector<1x128xf32>
    %414 = math.rsqrt %413 : vector<1x128xf32>
    %415 = arith.mulf %410, %414 : vector<1x128xf32>
    %416 = arith.mulf %410, %363 : vector<1x128xf32>
    %417 = arith.subf %293, %416 : vector<1x128xf32>
    %418 = arith.mulf %410, %363 : vector<1x128xf32>
    %419 = arith.addf %356, %418 : vector<1x128xf32>
    %cst_87 = arith.constant 0.000000e+00 : f32
    %420 = vector.broadcast %cst_87 : f32 to vector<1x128xf32>
    %421 = arith.mulf %414, %360 : vector<1x128xf32>
    %422 = arith.mulf %415, %357 : vector<1x128xf32>
    %423 = arith.subf %421, %422 : vector<1x128xf32>
    %424 = arith.mulf %415, %360 : vector<1x128xf32>
    %425 = arith.mulf %414, %357 : vector<1x128xf32>
    %426 = arith.addf %424, %425 : vector<1x128xf32>
    %427 = arith.mulf %414, %306 : vector<1x128xf32>
    %428 = arith.mulf %415, %369 : vector<1x128xf32>
    %429 = arith.subf %427, %428 : vector<1x128xf32>
    %430 = arith.mulf %415, %306 : vector<1x128xf32>
    %431 = arith.mulf %414, %369 : vector<1x128xf32>
    %432 = arith.addf %430, %431 : vector<1x128xf32>
    %433 = arith.mulf %414, %312 : vector<1x128xf32>
    %434 = arith.mulf %415, %375 : vector<1x128xf32>
    %435 = arith.subf %433, %434 : vector<1x128xf32>
    %436 = arith.mulf %415, %312 : vector<1x128xf32>
    %437 = arith.mulf %414, %375 : vector<1x128xf32>
    %438 = arith.addf %436, %437 : vector<1x128xf32>
    %439 = arith.mulf %414, %318 : vector<1x128xf32>
    %440 = arith.mulf %415, %381 : vector<1x128xf32>
    %441 = arith.subf %439, %440 : vector<1x128xf32>
    %442 = arith.mulf %415, %318 : vector<1x128xf32>
    %443 = arith.mulf %414, %381 : vector<1x128xf32>
    %444 = arith.addf %442, %443 : vector<1x128xf32>
    %445 = math.absf %423 : vector<1x128xf32>
    %cst_88 = arith.constant 1.000000e-30 : f32
    %446 = vector.broadcast %cst_88 : f32 to vector<1x128xf32>
    %447 = arith.cmpf ogt, %445, %446 : vector<1x128xf32>
    %cst_89 = arith.constant 1.000000e+00 : f32
    %448 = vector.broadcast %cst_89 : f32 to vector<1x128xf32>
    %449 = arith.select %447, %423, %448 : vector<1x128xi1>, vector<1x128xf32>
    %450 = arith.subf %417, %354 : vector<1x128xf32>
    %451 = tpu.reciprocal %449 {approx = true} : vector<1x128xf32> -> vector<1x128xf32>
    %cst_90 = arith.constant 5.000000e-01 : f32
    %452 = vector.broadcast %cst_90 : f32 to vector<1x128xf32>
    %453 = arith.mulf %452, %451 : vector<1x128xf32>
    %454 = arith.mulf %450, %453 : vector<1x128xf32>
    %cst_91 = arith.constant -9.99999984E+17 : f32
    %cst_92 = arith.constant 9.99999984E+17 : f32
    %455 = vector.broadcast %cst_91 : f32 to vector<1x128xf32>
    %456 = arith.maximumf %455, %454 : vector<1x128xf32>
    %457 = vector.broadcast %cst_92 : f32 to vector<1x128xf32>
    %458 = arith.minimumf %457, %456 : vector<1x128xf32>
    %cst_93 = arith.constant 0.000000e+00 : f32
    %459 = vector.broadcast %cst_93 : f32 to vector<1x128xf32>
    %460 = arith.cmpf oge, %458, %459 : vector<1x128xf32>
    %cst_94 = arith.constant 1.000000e+00 : f32
    %cst_95 = arith.constant -1.000000e+00 : f32
    %461 = vector.broadcast %cst_94 : f32 to vector<1x128xf32>
    %462 = vector.broadcast %cst_95 : f32 to vector<1x128xf32>
    %463 = arith.select %460, %461, %462 : vector<1x128xi1>, vector<1x128xf32>
    %464 = math.absf %458 : vector<1x128xf32>
    %465 = arith.mulf %458, %458 : vector<1x128xf32>
    %cst_96 = arith.constant 1.000000e+00 : f32
    %466 = vector.broadcast %cst_96 : f32 to vector<1x128xf32>
    %467 = arith.addf %465, %466 : vector<1x128xf32>
    %468 = math.sqrt %467 : vector<1x128xf32>
    %469 = arith.addf %464, %468 : vector<1x128xf32>
    %470 = tpu.reciprocal %469 {approx = true} : vector<1x128xf32> -> vector<1x128xf32>
    %471 = arith.mulf %463, %470 : vector<1x128xf32>
    %cst_97 = arith.constant 0.000000e+00 : f32
    %472 = vector.broadcast %cst_97 : f32 to vector<1x128xf32>
    %473 = arith.select %447, %471, %472 : vector<1x128xi1>, vector<1x128xf32>
    %474 = arith.mulf %473, %473 : vector<1x128xf32>
    %cst_98 = arith.constant 1.000000e+00 : f32
    %475 = vector.broadcast %cst_98 : f32 to vector<1x128xf32>
    %476 = arith.addf %474, %475 : vector<1x128xf32>
    %477 = math.rsqrt %476 : vector<1x128xf32>
    %478 = arith.mulf %473, %477 : vector<1x128xf32>
    %479 = arith.mulf %473, %423 : vector<1x128xf32>
    %480 = arith.subf %354, %479 : vector<1x128xf32>
    %481 = arith.mulf %473, %423 : vector<1x128xf32>
    %482 = arith.addf %417, %481 : vector<1x128xf32>
    %cst_99 = arith.constant 0.000000e+00 : f32
    %483 = vector.broadcast %cst_99 : f32 to vector<1x128xf32>
    %484 = arith.mulf %477, %426 : vector<1x128xf32>
    %485 = arith.mulf %478, %420 : vector<1x128xf32>
    %486 = arith.subf %484, %485 : vector<1x128xf32>
    %487 = arith.mulf %478, %426 : vector<1x128xf32>
    %488 = arith.mulf %477, %420 : vector<1x128xf32>
    %489 = arith.addf %487, %488 : vector<1x128xf32>
    %490 = arith.mulf %477, %366 : vector<1x128xf32>
    %491 = arith.mulf %478, %429 : vector<1x128xf32>
    %492 = arith.subf %490, %491 : vector<1x128xf32>
    %493 = arith.mulf %478, %366 : vector<1x128xf32>
    %494 = arith.mulf %477, %429 : vector<1x128xf32>
    %495 = arith.addf %493, %494 : vector<1x128xf32>
    %496 = arith.mulf %477, %372 : vector<1x128xf32>
    %497 = arith.mulf %478, %435 : vector<1x128xf32>
    %498 = arith.subf %496, %497 : vector<1x128xf32>
    %499 = arith.mulf %478, %372 : vector<1x128xf32>
    %500 = arith.mulf %477, %435 : vector<1x128xf32>
    %501 = arith.addf %499, %500 : vector<1x128xf32>
    %502 = arith.mulf %477, %378 : vector<1x128xf32>
    %503 = arith.mulf %478, %441 : vector<1x128xf32>
    %504 = arith.subf %502, %503 : vector<1x128xf32>
    %505 = arith.mulf %478, %378 : vector<1x128xf32>
    %506 = arith.mulf %477, %441 : vector<1x128xf32>
    %507 = arith.addf %505, %506 : vector<1x128xf32>
    %508 = math.absf %486 : vector<1x128xf32>
    %cst_100 = arith.constant 1.000000e-30 : f32
    %509 = vector.broadcast %cst_100 : f32 to vector<1x128xf32>
    %510 = arith.cmpf ogt, %508, %509 : vector<1x128xf32>
    %cst_101 = arith.constant 1.000000e+00 : f32
    %511 = vector.broadcast %cst_101 : f32 to vector<1x128xf32>
    %512 = arith.select %510, %486, %511 : vector<1x128xi1>, vector<1x128xf32>
    %513 = arith.subf %419, %480 : vector<1x128xf32>
    %514 = tpu.reciprocal %512 {approx = true} : vector<1x128xf32> -> vector<1x128xf32>
    %cst_102 = arith.constant 5.000000e-01 : f32
    %515 = vector.broadcast %cst_102 : f32 to vector<1x128xf32>
    %516 = arith.mulf %515, %514 : vector<1x128xf32>
    %517 = arith.mulf %513, %516 : vector<1x128xf32>
    %cst_103 = arith.constant -9.99999984E+17 : f32
    %cst_104 = arith.constant 9.99999984E+17 : f32
    %518 = vector.broadcast %cst_103 : f32 to vector<1x128xf32>
    %519 = arith.maximumf %518, %517 : vector<1x128xf32>
    %520 = vector.broadcast %cst_104 : f32 to vector<1x128xf32>
    %521 = arith.minimumf %520, %519 : vector<1x128xf32>
    %cst_105 = arith.constant 0.000000e+00 : f32
    %522 = vector.broadcast %cst_105 : f32 to vector<1x128xf32>
    %523 = arith.cmpf oge, %521, %522 : vector<1x128xf32>
    %cst_106 = arith.constant 1.000000e+00 : f32
    %cst_107 = arith.constant -1.000000e+00 : f32
    %524 = vector.broadcast %cst_106 : f32 to vector<1x128xf32>
    %525 = vector.broadcast %cst_107 : f32 to vector<1x128xf32>
    %526 = arith.select %523, %524, %525 : vector<1x128xi1>, vector<1x128xf32>
    %527 = math.absf %521 : vector<1x128xf32>
    %528 = arith.mulf %521, %521 : vector<1x128xf32>
    %cst_108 = arith.constant 1.000000e+00 : f32
    %529 = vector.broadcast %cst_108 : f32 to vector<1x128xf32>
    %530 = arith.addf %528, %529 : vector<1x128xf32>
    %531 = math.sqrt %530 : vector<1x128xf32>
    %532 = arith.addf %527, %531 : vector<1x128xf32>
    %533 = tpu.reciprocal %532 {approx = true} : vector<1x128xf32> -> vector<1x128xf32>
    %534 = arith.mulf %526, %533 : vector<1x128xf32>
    %cst_109 = arith.constant 0.000000e+00 : f32
    %535 = vector.broadcast %cst_109 : f32 to vector<1x128xf32>
    %536 = arith.select %510, %534, %535 : vector<1x128xi1>, vector<1x128xf32>
    %537 = arith.mulf %536, %536 : vector<1x128xf32>
    %cst_110 = arith.constant 1.000000e+00 : f32
    %538 = vector.broadcast %cst_110 : f32 to vector<1x128xf32>
    %539 = arith.addf %537, %538 : vector<1x128xf32>
    %540 = math.rsqrt %539 : vector<1x128xf32>
    %541 = arith.mulf %536, %540 : vector<1x128xf32>
    %542 = arith.mulf %536, %486 : vector<1x128xf32>
    %543 = arith.subf %480, %542 : vector<1x128xf32>
    %544 = arith.mulf %536, %486 : vector<1x128xf32>
    %545 = arith.addf %419, %544 : vector<1x128xf32>
    %cst_111 = arith.constant 0.000000e+00 : f32
    %546 = vector.broadcast %cst_111 : f32 to vector<1x128xf32>
    %547 = arith.mulf %540, %483 : vector<1x128xf32>
    %548 = arith.mulf %541, %489 : vector<1x128xf32>
    %549 = arith.subf %547, %548 : vector<1x128xf32>
    %550 = arith.mulf %541, %483 : vector<1x128xf32>
    %551 = arith.mulf %540, %489 : vector<1x128xf32>
    %552 = arith.addf %550, %551 : vector<1x128xf32>
    %553 = arith.mulf %540, %492 : vector<1x128xf32>
    %554 = arith.mulf %541, %432 : vector<1x128xf32>
    %555 = arith.subf %553, %554 : vector<1x128xf32>
    %556 = arith.mulf %541, %492 : vector<1x128xf32>
    %557 = arith.mulf %540, %432 : vector<1x128xf32>
    %558 = arith.addf %556, %557 : vector<1x128xf32>
    %559 = arith.mulf %540, %498 : vector<1x128xf32>
    %560 = arith.mulf %541, %438 : vector<1x128xf32>
    %561 = arith.subf %559, %560 : vector<1x128xf32>
    %562 = arith.mulf %541, %498 : vector<1x128xf32>
    %563 = arith.mulf %540, %438 : vector<1x128xf32>
    %564 = arith.addf %562, %563 : vector<1x128xf32>
    %565 = arith.mulf %540, %504 : vector<1x128xf32>
    %566 = arith.mulf %541, %444 : vector<1x128xf32>
    %567 = arith.subf %565, %566 : vector<1x128xf32>
    %568 = arith.mulf %541, %504 : vector<1x128xf32>
    %569 = arith.mulf %540, %444 : vector<1x128xf32>
    %570 = arith.addf %568, %569 : vector<1x128xf32>
    %571 = math.absf %552 : vector<1x128xf32>
    %cst_112 = arith.constant 1.000000e-30 : f32
    %572 = vector.broadcast %cst_112 : f32 to vector<1x128xf32>
    %573 = arith.cmpf ogt, %571, %572 : vector<1x128xf32>
    %cst_113 = arith.constant 1.000000e+00 : f32
    %574 = vector.broadcast %cst_113 : f32 to vector<1x128xf32>
    %575 = arith.select %573, %552, %574 : vector<1x128xi1>, vector<1x128xf32>
    %576 = arith.subf %545, %482 : vector<1x128xf32>
    %577 = tpu.reciprocal %575 {approx = true} : vector<1x128xf32> -> vector<1x128xf32>
    %cst_114 = arith.constant 5.000000e-01 : f32
    %578 = vector.broadcast %cst_114 : f32 to vector<1x128xf32>
    %579 = arith.mulf %578, %577 : vector<1x128xf32>
    %580 = arith.mulf %576, %579 : vector<1x128xf32>
    %cst_115 = arith.constant -9.99999984E+17 : f32
    %cst_116 = arith.constant 9.99999984E+17 : f32
    %581 = vector.broadcast %cst_115 : f32 to vector<1x128xf32>
    %582 = arith.maximumf %581, %580 : vector<1x128xf32>
    %583 = vector.broadcast %cst_116 : f32 to vector<1x128xf32>
    %584 = arith.minimumf %583, %582 : vector<1x128xf32>
    %cst_117 = arith.constant 0.000000e+00 : f32
    %585 = vector.broadcast %cst_117 : f32 to vector<1x128xf32>
    %586 = arith.cmpf oge, %584, %585 : vector<1x128xf32>
    %cst_118 = arith.constant 1.000000e+00 : f32
    %cst_119 = arith.constant -1.000000e+00 : f32
    %587 = vector.broadcast %cst_118 : f32 to vector<1x128xf32>
    %588 = vector.broadcast %cst_119 : f32 to vector<1x128xf32>
    %589 = arith.select %586, %587, %588 : vector<1x128xi1>, vector<1x128xf32>
    %590 = math.absf %584 : vector<1x128xf32>
    %591 = arith.mulf %584, %584 : vector<1x128xf32>
    %cst_120 = arith.constant 1.000000e+00 : f32
    %592 = vector.broadcast %cst_120 : f32 to vector<1x128xf32>
    %593 = arith.addf %591, %592 : vector<1x128xf32>
    %594 = math.sqrt %593 : vector<1x128xf32>
    %595 = arith.addf %590, %594 : vector<1x128xf32>
    %596 = tpu.reciprocal %595 {approx = true} : vector<1x128xf32> -> vector<1x128xf32>
    %597 = arith.mulf %589, %596 : vector<1x128xf32>
    %cst_121 = arith.constant 0.000000e+00 : f32
    %598 = vector.broadcast %cst_121 : f32 to vector<1x128xf32>
    %599 = arith.select %573, %597, %598 : vector<1x128xi1>, vector<1x128xf32>
    %600 = arith.mulf %599, %599 : vector<1x128xf32>
    %cst_122 = arith.constant 1.000000e+00 : f32
    %601 = vector.broadcast %cst_122 : f32 to vector<1x128xf32>
    %602 = arith.addf %600, %601 : vector<1x128xf32>
    %603 = math.rsqrt %602 : vector<1x128xf32>
    %604 = arith.mulf %599, %603 : vector<1x128xf32>
    %605 = arith.mulf %599, %552 : vector<1x128xf32>
    %606 = arith.subf %482, %605 : vector<1x128xf32>
    %607 = arith.mulf %599, %552 : vector<1x128xf32>
    %608 = arith.addf %545, %607 : vector<1x128xf32>
    %cst_123 = arith.constant 0.000000e+00 : f32
    %609 = vector.broadcast %cst_123 : f32 to vector<1x128xf32>
    %610 = arith.mulf %603, %549 : vector<1x128xf32>
    %611 = arith.mulf %604, %546 : vector<1x128xf32>
    %612 = arith.subf %610, %611 : vector<1x128xf32>
    %613 = arith.mulf %604, %549 : vector<1x128xf32>
    %614 = arith.mulf %603, %546 : vector<1x128xf32>
    %615 = arith.addf %613, %614 : vector<1x128xf32>
    %616 = arith.mulf %603, %495 : vector<1x128xf32>
    %617 = arith.mulf %604, %558 : vector<1x128xf32>
    %618 = arith.subf %616, %617 : vector<1x128xf32>
    %619 = arith.mulf %604, %495 : vector<1x128xf32>
    %620 = arith.mulf %603, %558 : vector<1x128xf32>
    %621 = arith.addf %619, %620 : vector<1x128xf32>
    %622 = arith.mulf %603, %501 : vector<1x128xf32>
    %623 = arith.mulf %604, %564 : vector<1x128xf32>
    %624 = arith.subf %622, %623 : vector<1x128xf32>
    %625 = arith.mulf %604, %501 : vector<1x128xf32>
    %626 = arith.mulf %603, %564 : vector<1x128xf32>
    %627 = arith.addf %625, %626 : vector<1x128xf32>
    %628 = arith.mulf %603, %507 : vector<1x128xf32>
    %629 = arith.mulf %604, %570 : vector<1x128xf32>
    %630 = arith.subf %628, %629 : vector<1x128xf32>
    %631 = arith.mulf %604, %507 : vector<1x128xf32>
    %632 = arith.mulf %603, %570 : vector<1x128xf32>
    %633 = arith.addf %631, %632 : vector<1x128xf32>
    %634 = math.absf %612 : vector<1x128xf32>
    %cst_124 = arith.constant 1.000000e-30 : f32
    %635 = vector.broadcast %cst_124 : f32 to vector<1x128xf32>
    %636 = arith.cmpf ogt, %634, %635 : vector<1x128xf32>
    %cst_125 = arith.constant 1.000000e+00 : f32
    %637 = vector.broadcast %cst_125 : f32 to vector<1x128xf32>
    %638 = arith.select %636, %612, %637 : vector<1x128xi1>, vector<1x128xf32>
    %639 = arith.subf %606, %543 : vector<1x128xf32>
    %640 = tpu.reciprocal %638 {approx = true} : vector<1x128xf32> -> vector<1x128xf32>
    %cst_126 = arith.constant 5.000000e-01 : f32
    %641 = vector.broadcast %cst_126 : f32 to vector<1x128xf32>
    %642 = arith.mulf %641, %640 : vector<1x128xf32>
    %643 = arith.mulf %639, %642 : vector<1x128xf32>
    %cst_127 = arith.constant -9.99999984E+17 : f32
    %cst_128 = arith.constant 9.99999984E+17 : f32
    %644 = vector.broadcast %cst_127 : f32 to vector<1x128xf32>
    %645 = arith.maximumf %644, %643 : vector<1x128xf32>
    %646 = vector.broadcast %cst_128 : f32 to vector<1x128xf32>
    %647 = arith.minimumf %646, %645 : vector<1x128xf32>
    %cst_129 = arith.constant 0.000000e+00 : f32
    %648 = vector.broadcast %cst_129 : f32 to vector<1x128xf32>
    %649 = arith.cmpf oge, %647, %648 : vector<1x128xf32>
    %cst_130 = arith.constant 1.000000e+00 : f32
    %cst_131 = arith.constant -1.000000e+00 : f32
    %650 = vector.broadcast %cst_130 : f32 to vector<1x128xf32>
    %651 = vector.broadcast %cst_131 : f32 to vector<1x128xf32>
    %652 = arith.select %649, %650, %651 : vector<1x128xi1>, vector<1x128xf32>
    %653 = math.absf %647 : vector<1x128xf32>
    %654 = arith.mulf %647, %647 : vector<1x128xf32>
    %cst_132 = arith.constant 1.000000e+00 : f32
    %655 = vector.broadcast %cst_132 : f32 to vector<1x128xf32>
    %656 = arith.addf %654, %655 : vector<1x128xf32>
    %657 = math.sqrt %656 : vector<1x128xf32>
    %658 = arith.addf %653, %657 : vector<1x128xf32>
    %659 = tpu.reciprocal %658 {approx = true} : vector<1x128xf32> -> vector<1x128xf32>
    %660 = arith.mulf %652, %659 : vector<1x128xf32>
    %cst_133 = arith.constant 0.000000e+00 : f32
    %661 = vector.broadcast %cst_133 : f32 to vector<1x128xf32>
    %662 = arith.select %636, %660, %661 : vector<1x128xi1>, vector<1x128xf32>
    %663 = arith.mulf %662, %662 : vector<1x128xf32>
    %cst_134 = arith.constant 1.000000e+00 : f32
    %664 = vector.broadcast %cst_134 : f32 to vector<1x128xf32>
    %665 = arith.addf %663, %664 : vector<1x128xf32>
    %666 = math.rsqrt %665 : vector<1x128xf32>
    %667 = arith.mulf %662, %666 : vector<1x128xf32>
    %668 = arith.mulf %662, %612 : vector<1x128xf32>
    %669 = arith.subf %543, %668 : vector<1x128xf32>
    %670 = arith.mulf %662, %612 : vector<1x128xf32>
    %671 = arith.addf %606, %670 : vector<1x128xf32>
    %cst_135 = arith.constant 0.000000e+00 : f32
    %672 = vector.broadcast %cst_135 : f32 to vector<1x128xf32>
    %673 = arith.mulf %666, %615 : vector<1x128xf32>
    %674 = arith.mulf %667, %609 : vector<1x128xf32>
    %675 = arith.subf %673, %674 : vector<1x128xf32>
    %676 = arith.mulf %667, %615 : vector<1x128xf32>
    %677 = arith.mulf %666, %609 : vector<1x128xf32>
    %678 = arith.addf %676, %677 : vector<1x128xf32>
    %679 = arith.mulf %666, %555 : vector<1x128xf32>
    %680 = arith.mulf %667, %618 : vector<1x128xf32>
    %681 = arith.subf %679, %680 : vector<1x128xf32>
    %682 = arith.mulf %667, %555 : vector<1x128xf32>
    %683 = arith.mulf %666, %618 : vector<1x128xf32>
    %684 = arith.addf %682, %683 : vector<1x128xf32>
    %685 = arith.mulf %666, %561 : vector<1x128xf32>
    %686 = arith.mulf %667, %624 : vector<1x128xf32>
    %687 = arith.subf %685, %686 : vector<1x128xf32>
    %688 = arith.mulf %667, %561 : vector<1x128xf32>
    %689 = arith.mulf %666, %624 : vector<1x128xf32>
    %690 = arith.addf %688, %689 : vector<1x128xf32>
    %691 = arith.mulf %666, %567 : vector<1x128xf32>
    %692 = arith.mulf %667, %630 : vector<1x128xf32>
    %693 = arith.subf %691, %692 : vector<1x128xf32>
    %694 = arith.mulf %667, %567 : vector<1x128xf32>
    %695 = arith.mulf %666, %630 : vector<1x128xf32>
    %696 = arith.addf %694, %695 : vector<1x128xf32>
    %697 = math.absf %675 : vector<1x128xf32>
    %cst_136 = arith.constant 1.000000e-30 : f32
    %698 = vector.broadcast %cst_136 : f32 to vector<1x128xf32>
    %699 = arith.cmpf ogt, %697, %698 : vector<1x128xf32>
    %cst_137 = arith.constant 1.000000e+00 : f32
    %700 = vector.broadcast %cst_137 : f32 to vector<1x128xf32>
    %701 = arith.select %699, %675, %700 : vector<1x128xi1>, vector<1x128xf32>
    %702 = arith.subf %608, %669 : vector<1x128xf32>
    %703 = tpu.reciprocal %701 {approx = true} : vector<1x128xf32> -> vector<1x128xf32>
    %cst_138 = arith.constant 5.000000e-01 : f32
    %704 = vector.broadcast %cst_138 : f32 to vector<1x128xf32>
    %705 = arith.mulf %704, %703 : vector<1x128xf32>
    %706 = arith.mulf %702, %705 : vector<1x128xf32>
    %cst_139 = arith.constant -9.99999984E+17 : f32
    %cst_140 = arith.constant 9.99999984E+17 : f32
    %707 = vector.broadcast %cst_139 : f32 to vector<1x128xf32>
    %708 = arith.maximumf %707, %706 : vector<1x128xf32>
    %709 = vector.broadcast %cst_140 : f32 to vector<1x128xf32>
    %710 = arith.minimumf %709, %708 : vector<1x128xf32>
    %cst_141 = arith.constant 0.000000e+00 : f32
    %711 = vector.broadcast %cst_141 : f32 to vector<1x128xf32>
    %712 = arith.cmpf oge, %710, %711 : vector<1x128xf32>
    %cst_142 = arith.constant 1.000000e+00 : f32
    %cst_143 = arith.constant -1.000000e+00 : f32
    %713 = vector.broadcast %cst_142 : f32 to vector<1x128xf32>
    %714 = vector.broadcast %cst_143 : f32 to vector<1x128xf32>
    %715 = arith.select %712, %713, %714 : vector<1x128xi1>, vector<1x128xf32>
    %716 = math.absf %710 : vector<1x128xf32>
    %717 = arith.mulf %710, %710 : vector<1x128xf32>
    %cst_144 = arith.constant 1.000000e+00 : f32
    %718 = vector.broadcast %cst_144 : f32 to vector<1x128xf32>
    %719 = arith.addf %717, %718 : vector<1x128xf32>
    %720 = math.sqrt %719 : vector<1x128xf32>
    %721 = arith.addf %716, %720 : vector<1x128xf32>
    %722 = tpu.reciprocal %721 {approx = true} : vector<1x128xf32> -> vector<1x128xf32>
    %723 = arith.mulf %715, %722 : vector<1x128xf32>
    %cst_145 = arith.constant 0.000000e+00 : f32
    %724 = vector.broadcast %cst_145 : f32 to vector<1x128xf32>
    %725 = arith.select %699, %723, %724 : vector<1x128xi1>, vector<1x128xf32>
    %726 = arith.mulf %725, %725 : vector<1x128xf32>
    %cst_146 = arith.constant 1.000000e+00 : f32
    %727 = vector.broadcast %cst_146 : f32 to vector<1x128xf32>
    %728 = arith.addf %726, %727 : vector<1x128xf32>
    %729 = math.rsqrt %728 : vector<1x128xf32>
    %730 = arith.mulf %725, %729 : vector<1x128xf32>
    %731 = arith.mulf %725, %675 : vector<1x128xf32>
    %732 = arith.subf %669, %731 : vector<1x128xf32>
    %733 = arith.mulf %725, %675 : vector<1x128xf32>
    %734 = arith.addf %608, %733 : vector<1x128xf32>
    %735 = arith.mulf %730, %672 : vector<1x128xf32>
    %736 = arith.mulf %729, %678 : vector<1x128xf32>
    %737 = arith.addf %735, %736 : vector<1x128xf32>
    %738 = arith.mulf %729, %681 : vector<1x128xf32>
    %739 = arith.mulf %730, %621 : vector<1x128xf32>
    %740 = arith.subf %738, %739 : vector<1x128xf32>
    %741 = arith.mulf %730, %681 : vector<1x128xf32>
    %742 = arith.mulf %729, %621 : vector<1x128xf32>
    %743 = arith.addf %741, %742 : vector<1x128xf32>
    %744 = arith.mulf %729, %687 : vector<1x128xf32>
    %745 = arith.mulf %730, %627 : vector<1x128xf32>
    %746 = arith.subf %744, %745 : vector<1x128xf32>
    %747 = arith.mulf %730, %687 : vector<1x128xf32>
    %748 = arith.mulf %729, %627 : vector<1x128xf32>
    %749 = arith.addf %747, %748 : vector<1x128xf32>
    %750 = arith.mulf %729, %693 : vector<1x128xf32>
    %751 = arith.mulf %730, %633 : vector<1x128xf32>
    %752 = arith.subf %750, %751 : vector<1x128xf32>
    %753 = arith.mulf %730, %693 : vector<1x128xf32>
    %754 = arith.mulf %729, %633 : vector<1x128xf32>
    %755 = arith.addf %753, %754 : vector<1x128xf32>
    %756 = math.absf %737 : vector<1x128xf32>
    %cst_147 = arith.constant 1.000000e-30 : f32
    %757 = vector.broadcast %cst_147 : f32 to vector<1x128xf32>
    %758 = arith.cmpf ogt, %756, %757 : vector<1x128xf32>
    %cst_148 = arith.constant 1.000000e+00 : f32
    %759 = vector.broadcast %cst_148 : f32 to vector<1x128xf32>
    %760 = arith.select %758, %737, %759 : vector<1x128xi1>, vector<1x128xf32>
    %761 = arith.subf %734, %671 : vector<1x128xf32>
    %762 = tpu.reciprocal %760 {approx = true} : vector<1x128xf32> -> vector<1x128xf32>
    %cst_149 = arith.constant 5.000000e-01 : f32
    %763 = vector.broadcast %cst_149 : f32 to vector<1x128xf32>
    %764 = arith.mulf %763, %762 : vector<1x128xf32>
    %765 = arith.mulf %761, %764 : vector<1x128xf32>
    %cst_150 = arith.constant -9.99999984E+17 : f32
    %cst_151 = arith.constant 9.99999984E+17 : f32
    %766 = vector.broadcast %cst_150 : f32 to vector<1x128xf32>
    %767 = arith.maximumf %766, %765 : vector<1x128xf32>
    %768 = vector.broadcast %cst_151 : f32 to vector<1x128xf32>
    %769 = arith.minimumf %768, %767 : vector<1x128xf32>
    %cst_152 = arith.constant 0.000000e+00 : f32
    %770 = vector.broadcast %cst_152 : f32 to vector<1x128xf32>
    %771 = arith.cmpf oge, %769, %770 : vector<1x128xf32>
    %cst_153 = arith.constant 1.000000e+00 : f32
    %cst_154 = arith.constant -1.000000e+00 : f32
    %772 = vector.broadcast %cst_153 : f32 to vector<1x128xf32>
    %773 = vector.broadcast %cst_154 : f32 to vector<1x128xf32>
    %774 = arith.select %771, %772, %773 : vector<1x128xi1>, vector<1x128xf32>
    %775 = math.absf %769 : vector<1x128xf32>
    %776 = arith.mulf %769, %769 : vector<1x128xf32>
    %cst_155 = arith.constant 1.000000e+00 : f32
    %777 = vector.broadcast %cst_155 : f32 to vector<1x128xf32>
    %778 = arith.addf %776, %777 : vector<1x128xf32>
    %779 = math.sqrt %778 : vector<1x128xf32>
    %780 = arith.addf %775, %779 : vector<1x128xf32>
    %781 = tpu.reciprocal %780 {approx = true} : vector<1x128xf32> -> vector<1x128xf32>
    %782 = arith.mulf %774, %781 : vector<1x128xf32>
    %cst_156 = arith.constant 0.000000e+00 : f32
    %783 = vector.broadcast %cst_156 : f32 to vector<1x128xf32>
    %784 = arith.select %758, %782, %783 : vector<1x128xi1>, vector<1x128xf32>
    %785 = arith.mulf %784, %784 : vector<1x128xf32>
    %cst_157 = arith.constant 1.000000e+00 : f32
    %786 = vector.broadcast %cst_157 : f32 to vector<1x128xf32>
    %787 = arith.addf %785, %786 : vector<1x128xf32>
    %788 = math.rsqrt %787 : vector<1x128xf32>
    %789 = arith.mulf %784, %788 : vector<1x128xf32>
    %790 = arith.mulf %784, %737 : vector<1x128xf32>
    %791 = arith.subf %671, %790 : vector<1x128xf32>
    %792 = arith.mulf %784, %737 : vector<1x128xf32>
    %793 = arith.addf %734, %792 : vector<1x128xf32>
    %794 = arith.mulf %788, %684 : vector<1x128xf32>
    %795 = arith.mulf %789, %743 : vector<1x128xf32>
    %796 = arith.subf %794, %795 : vector<1x128xf32>
    %797 = arith.mulf %789, %684 : vector<1x128xf32>
    %798 = arith.mulf %788, %743 : vector<1x128xf32>
    %799 = arith.addf %797, %798 : vector<1x128xf32>
    %800 = arith.mulf %788, %690 : vector<1x128xf32>
    %801 = arith.mulf %789, %749 : vector<1x128xf32>
    %802 = arith.subf %800, %801 : vector<1x128xf32>
    %803 = arith.mulf %789, %690 : vector<1x128xf32>
    %804 = arith.mulf %788, %749 : vector<1x128xf32>
    %805 = arith.addf %803, %804 : vector<1x128xf32>
    %806 = arith.mulf %788, %696 : vector<1x128xf32>
    %807 = arith.mulf %789, %755 : vector<1x128xf32>
    %808 = arith.subf %806, %807 : vector<1x128xf32>
    %809 = arith.mulf %789, %696 : vector<1x128xf32>
    %810 = arith.mulf %788, %755 : vector<1x128xf32>
    %811 = arith.addf %809, %810 : vector<1x128xf32>
    %812 = arith.maximumf %732, %791 : vector<1x128xf32>
    %813 = arith.maximumf %812, %793 : vector<1x128xf32>
    %814 = arith.minimumf %732, %791 : vector<1x128xf32>
    %815 = arith.minimumf %814, %793 : vector<1x128xf32>
    %816 = arith.addf %732, %791 : vector<1x128xf32>
    %817 = arith.addf %816, %793 : vector<1x128xf32>
    %818 = arith.subf %817, %813 : vector<1x128xf32>
    %819 = arith.subf %818, %815 : vector<1x128xf32>
    %820 = arith.cmpf oge, %732, %791 : vector<1x128xf32>
    %821 = arith.cmpf oge, %732, %793 : vector<1x128xf32>
    %822 = arith.andi %820, %821 : vector<1x128xi1>
    %cst_158 = arith.constant dense<true> : vector<1x128xi1>
    %823 = arith.xori %822, %cst_158 : vector<1x128xi1>
    %824 = arith.cmpf oge, %791, %793 : vector<1x128xf32>
    %825 = arith.andi %823, %824 : vector<1x128xi1>
    %826 = arith.select %825, %796, %799 : vector<1x128xi1>, vector<1x128xf32>
    %827 = arith.select %822, %740, %826 : vector<1x128xi1>, vector<1x128xf32>
    %828 = arith.select %825, %802, %805 : vector<1x128xi1>, vector<1x128xf32>
    %829 = arith.select %822, %746, %828 : vector<1x128xi1>, vector<1x128xf32>
    %830 = arith.select %825, %808, %811 : vector<1x128xi1>, vector<1x128xf32>
    %831 = arith.select %822, %752, %830 : vector<1x128xi1>, vector<1x128xf32>
    %832 = tpu.iota {dimensions = array<i32: 0>} : vector<128x128xi32>
    %833 = vector.broadcast %0 : vector<1x128xi32> to vector<128x128xi32>
    %834 = arith.cmpi slt, %832, %833 : vector<128x128xi32>
    %cst_159 = arith.constant 1.000000e+00 : f32
    %cst_160 = arith.constant 0.000000e+00 : f32
    %835 = vector.broadcast %cst_159 : f32 to vector<128x128xf32>
    %836 = vector.broadcast %cst_160 : f32 to vector<128x128xf32>
    %837 = arith.select %834, %835, %836 : vector<128x128xi1>, vector<128x128xf32>
    %838 = vector.broadcast %23 : vector<1x128xf32> to vector<128x128xf32>
    %839 = arith.subf %9, %838 : vector<128x128xf32>
    %840 = vector.broadcast %24 : vector<1x128xf32> to vector<128x128xf32>
    %841 = arith.subf %11, %840 : vector<128x128xf32>
    %842 = vector.broadcast %25 : vector<1x128xf32> to vector<128x128xf32>
    %843 = arith.subf %13, %842 : vector<128x128xf32>
    %844 = vector.broadcast %827 : vector<1x128xf32> to vector<128x128xf32>
    %845 = arith.mulf %839, %844 : vector<128x128xf32>
    %846 = vector.broadcast %829 : vector<1x128xf32> to vector<128x128xf32>
    %847 = arith.mulf %841, %846 : vector<128x128xf32>
    %848 = arith.addf %845, %847 : vector<128x128xf32>
    %849 = vector.broadcast %831 : vector<1x128xf32> to vector<128x128xf32>
    %850 = arith.mulf %843, %849 : vector<128x128xf32>
    %851 = arith.addf %848, %850 : vector<128x128xf32>
    %852 = arith.mulf %839, %839 : vector<128x128xf32>
    %853 = arith.mulf %841, %841 : vector<128x128xf32>
    %854 = arith.addf %852, %853 : vector<128x128xf32>
    %855 = arith.mulf %843, %843 : vector<128x128xf32>
    %856 = arith.addf %854, %855 : vector<128x128xf32>
    %857 = arith.mulf %851, %851 : vector<128x128xf32>
    %858 = arith.subf %856, %857 : vector<128x128xf32>
    %cst_161 = arith.constant 0.000000e+00 : f32
    %859 = vector.broadcast %cst_161 : f32 to vector<128x128xf32>
    %860 = arith.maximumf %858, %859 : vector<128x128xf32>
    %861 = math.sqrt %860 : vector<128x128xf32>
    %862 = arith.mulf %851, %861 : vector<128x128xf32>
    %863 = arith.mulf %837, %862 : vector<128x128xf32>
    %cst_162 = arith.constant dense<0.000000e+00> : vector<128xf32>
    %864 = vector.multi_reduction <add>, %863, %cst_162 [0] : vector<128x128xf32> to vector<128xf32>
    %865 = vector.shape_cast %864 : vector<128xf32> to vector<1x128xf32>
    %cst_163 = arith.constant 0.000000e+00 : f32
    %866 = vector.broadcast %cst_163 : f32 to vector<1x128xf32>
    %cst_164 = arith.constant 0.000000e+00 : f32
    %867 = vector.broadcast %cst_164 : f32 to vector<1x128xf32>
    %cst_165 = arith.constant 0.000000e+00 : f32
    %868 = vector.broadcast %cst_165 : f32 to vector<6x128xf32>
    %869 = tpu.concatenate %1, %26, %27, %28, %49, %52, %55, %58, %61, %64, %819, %813, %827, %829, %831, %865 in 0 : vector<1x128xf32>, vector<1x128xf32>, vector<1x128xf32>, vector<1x128xf32>, vector<1x128xf32>, vector<1x128xf32>, vector<1x128xf32>, vector<1x128xf32>, vector<1x128xf32>, vector<1x128xf32>, vector<1x128xf32>, vector<1x128xf32>, vector<1x128xf32>, vector<1x128xf32>, vector<1x128xf32>, vector<1x128xf32> -> vector<16x128xf32>
    %870 = tpu.concatenate %866, %867, %868 in 0 : vector<1x128xf32>, vector<1x128xf32>, vector<6x128xf32> -> vector<8x128xf32>
    %871 = tpu.concatenate %869, %870 in 0 : vector<16x128xf32>, vector<8x128xf32> -> vector<24x128xf32>
    %c0_166 = arith.constant 0 : index
    %c0_167 = arith.constant 0 : index
    %872 = vector.load %arg3[%c0_166, %c0_167] : memref<24x128xf32, #tpu.memory_space<vmem>>, vector<24x128xf32>
    tpu.vector_store %arg3[%c0_166, %c0_167], %871 {strides = array<i32>} : memref<24x128xf32, #tpu.memory_space<vmem>>, vector<24x128xf32>,
    return
  }
  func.func @transform_0(%arg0: i32) -> (i32, i32) {
    %c0_i32 = arith.constant 0 : i32
    %c0_i32_0 = arith.constant 0 : i32
    return %c0_i32, %arg0 : i32, i32
  }
  func.func @transform_1(%arg0: i32) -> (i32, i32) {
    %c0_i32 = arith.constant 0 : i32
    %c0_i32_0 = arith.constant 0 : i32
    return %c0_i32, %arg0 : i32, i32
  }
  func.func @transform_2(%arg0: i32) -> (i32, i32) {
    %c0_i32 = arith.constant 0 : i32
    %c0_i32_0 = arith.constant 0 : i32
    return %c0_i32, %arg0 : i32, i32
  }
}

</mosaic_0001>

<llo_original>
// kernel: tpu_custom_call.1
$region0: #{tpu_custom_call.1}
  #allocation0 [shape = 'u32[]', space=smem, size = 0x4, offset = 0x4, fixed_abs, tag = 'smem constant byte address 0x4 - core index']
  #allocation1 [shape = 'u32[144,128]{1,0:T(1,128)}', space=vmem, size = 0x12000, scoped, tag = 'internal scratch']
  %s0 = inlined_call_operand.hbm [shape: s32[1,128], index: 0, kind: input, shape index: {}]
  %s1 = inlined_call_operand.hbm [shape: f32[384,128], index: 1, kind: input, shape index: {}]
  %s2 = inlined_call_operand.hbm [shape: f32[24,128], index: 2, kind: output, shape index: {}]
  %s3 = sld [smem:[#allocation0]]
  $region26: #{tpu_custom_call.1} parent=0
    _
  %s5 = ssub.s32 1, %s3
  %s6 = scalar_select 0, %s5, %s3
  $region1: #{tpu_custom_call.1} parent=0
    #allocation2 [shape = 'u8[512]{0}', space=vmem, size = 0x400, scoped, tag = 'input window, operand 0, single buffered']
    #allocation3 [shape = 's32[1]{0}', space=sflag, size = 0x4, scoped, tag = 'scoped memory for tpu_custom_call.1']
    #allocation4 [shape = 's32[1]{0}', space=sflag, size = 0x4, scoped, tag = 'scoped memory for tpu_custom_call.1']
    #allocation5 [shape = 'u8[196608]{0}', space=vmem, size = 0x30000, scoped, tag = 'input window, operand 1, single buffered']
    #allocation6 [shape = 's32[1]{0}', space=sflag, size = 0x4, scoped, tag = 'scoped memory for tpu_custom_call.1']
    #allocation7 [shape = 'u8[12288]{0}', space=vmem, size = 0x3000, scoped, tag = 'output window, operand 0, single buffered']
    %7 = vsyncpa [#allocation3], 0
    %8 = vsyncpa [#allocation6], 0
    %9 = vsyncpa [#allocation4], 0
    // Predicated region
    $region2: #{tpu_custom_call.1} parent=1 // pred_check
      _
    $region3: #{tpu_custom_call.1} parent=1 // pred_check_branch
      %11 = sbr.rel (0) target = $region5
    $region4: #{tpu_custom_call.1} parent=1 // pred_region
      %s13 = ssub.s32 16, 16
      %14 = vsyncadd [#allocation3], %s13
      %s16 = sshll.u32 [#allocation2], 4
      %s17 = int_to_ptr.vmem [resolvable:$true] %s16
      %19 = dma.hbm_to_vmem [thread:$0]  %s0, 16, %s17, [#allocation3]
    $region5: #{tpu_custom_call.1} parent=1 // pred_fallthru
      _
    // Predicated region
    $region6: #{tpu_custom_call.1} parent=1 // pred_check
      _
    $region7: #{tpu_custom_call.1} parent=1 // pred_check_branch
      %21 = sbr.rel (0) target = $region9
    $region8: #{tpu_custom_call.1} parent=1 // pred_region
      %s23 = ssub.s32 6144, 6144
      %24 = vsyncadd [#allocation6], %s23
      %s25 = sshll.u32 [#allocation5], 4
      %s26 = int_to_ptr.vmem [resolvable:$true] %s25
      %31 = dma.hbm_to_vmem [thread:$0]  %s1, 6144, %s26, [#allocation6], 128, 128, 8
    $region9: #{tpu_custom_call.1} parent=1 // pred_fallthru
      _
    // Predicated region
    $region10: #{tpu_custom_call.1} parent=1 // pred_check
      _
    $region11: #{tpu_custom_call.1} parent=1 // pred_check_branch
      %33 = sbr.rel (0) target = $region13
    $region12: #{tpu_custom_call.1} parent=1 // pred_region
      %34 = dma.done [#allocation3], 16
    $region13: #{tpu_custom_call.1} parent=1 // pred_fallthru
      _
    // Predicated region
    $region14: #{tpu_custom_call.1} parent=1 // pred_check
      _
    $region15: #{tpu_custom_call.1} parent=1 // pred_check_branch
      %36 = sbr.rel (0) target = $region17
    $region16: #{tpu_custom_call.1} parent=1 // pred_region
      %37 = dma.done [#allocation6], 6144
    $region17: #{tpu_custom_call.1} parent=1 // pred_fallthru
      _
    %v38 = vld [vmem:[#allocation2] sm:$0x1]
    %v39 = vcvt.s32.f32 %v38
    %v40 = vld [vmem:[#allocation5] sm:$0xff]
    %v41 = vld [vmem:[#allocation5 + $0x8] sm:$0xff]
    %v42 = vld [vmem:[#allocation5 + $0x10] sm:$0xff]
    %v43 = vld [vmem:[#allocation5 + $0x18] sm:$0xff]
    %v44 = vld [vmem:[#allocation5 + $0x20] sm:$0xff]
    %v45 = vld [vmem:[#allocation5 + $0x28] sm:$0xff]
    %v46 = vld [vmem:[#allocation5 + $0x30] sm:$0xff]
    %v47 = vld [vmem:[#allocation5 + $0x38] sm:$0xff]
    %v48 = vld [vmem:[#allocation5 + $0x40] sm:$0xff]
    %v49 = vld [vmem:[#allocation5 + $0x48] sm:$0xff]
    %v50 = vld [vmem:[#allocation5 + $0x50] sm:$0xff]
    %v51 = vld [vmem:[#allocation5 + $0x58] sm:$0xff]
    %v52 = vld [vmem:[#allocation5 + $0x60] sm:$0xff]
    %v53 = vld [vmem:[#allocation5 + $0x68] sm:$0xff]
    %v54 = vld [vmem:[#allocation5 + $0x70] sm:$0xff]
    %v55 = vld [vmem:[#allocation5 + $0x78] sm:$0xff]
    %v56 = vld [vmem:[#allocation5 + $0x80] sm:$0xff]
    %v57 = vld [vmem:[#allocation5 + $0x88] sm:$0xff]
    %v58 = vld [vmem:[#allocation5 + $0x90] sm:$0xff]
    %v59 = vld [vmem:[#allocation5 + $0x98] sm:$0xff]
    %v60 = vld [vmem:[#allocation5 + $0xa0] sm:$0xff]
    %v61 = vld [vmem:[#allocation5 + $0xa8] sm:$0xff]
    %v62 = vld [vmem:[#allocation5 + $0xb0] sm:$0xff]
    %v63 = vld [vmem:[#allocation5 + $0xb8] sm:$0xff]
    %v64 = vld [vmem:[#allocation5 + $0xc0] sm:$0xff]
    %v65 = vld [vmem:[#allocation5 + $0xc8] sm:$0xff]
    %v66 = vld [vmem:[#allocation5 + $0xd0] sm:$0xff]
    %v67 = vld [vmem:[#allocation5 + $0xd8] sm:$0xff]
    %v68 = vld [vmem:[#allocation5 + $0xe0] sm:$0xff]
    %v69 = vld [vmem:[#allocation5 + $0xe8] sm:$0xff]
    %v70 = vld [vmem:[#allocation5 + $0xf0] sm:$0xff]
    %v71 = vld [vmem:[#allocation5 + $0xf8] sm:$0xff]
    %v72 = vld [vmem:[#allocation5 + $0x100] sm:$0xff]
    %v73 = vld [vmem:[#allocation5 + $0x108] sm:$0xff]
    %v74 = vld [vmem:[#allocation5 + $0x110] sm:$0xff]
    %v75 = vld [vmem:[#allocation5 + $0x118] sm:$0xff]
    %v76 = vld [vmem:[#allocation5 + $0x120] sm:$0xff]
    %v77 = vld [vmem:[#allocation5 + $0x128] sm:$0xff]
    %v78 = vld [vmem:[#allocation5 + $0x130] sm:$0xff]
    %v79 = vld [vmem:[#allocation5 + $0x138] sm:$0xff]
    %v80 = vld [vmem:[#allocation5 + $0x140] sm:$0xff]
    %v81 = vld [vmem:[#allocation5 + $0x148] sm:$0xff]
    %v82 = vld [vmem:[#allocation5 + $0x150] sm:$0xff]
    %v83 = vld [vmem:[#allocation5 + $0x158] sm:$0xff]
    %v84 = vld [vmem:[#allocation5 + $0x160] sm:$0xff]
    %v85 = vld [vmem:[#allocation5 + $0x168] sm:$0xff]
    %v86 = vld [vmem:[#allocation5 + $0x170] sm:$0xff]
    %v87 = vld [vmem:[#allocation5 + $0x178] sm:$0xff]
    %v88 = vlaneseq
    %v89 = vshrl.u32 %v88, 7
    %v90 = vsub.s32 0, %v89
    %v91 = vrot.slane %v40, %v90
    %v92 = vsub.f32 %v40, %v91
    %v93 = vsub.f32 %v41, %v91
    %v94 = vsub.f32 %v42, %v91
    %v95 = vsub.f32 %v43, %v91
    %v96 = vsub.f32 %v44, %v91
    %v97 = vsub.f32 %v45, %v91
    %v98 = vsub.f32 %v46, %v91
    %v99 = vsub.f32 %v47, %v91
    %v100 = vsub.f32 %v48, %v91
    %v101 = vsub.f32 %v49, %v91
    %v102 = vsub.f32 %v50, %v91
    %v103 = vsub.f32 %v51, %v91
    %v104 = vsub.f32 %v52, %v91
    %v105 = vsub.f32 %v53, %v91
    %v106 = vsub.f32 %v54, %v91
    %v107 = vsub.f32 %v55, %v91
    %v108 = vlaneseq
    %v109 = vshrl.u32 %v108, 7
    %v110 = vsub.s32 0, %v109
    %v111 = vrot.slane %v56, %v110
    %v112 = vsub.f32 %v56, %v111
    %v113 = vsub.f32 %v57, %v111
    %v114 = vsub.f32 %v58, %v111
    %v115 = vsub.f32 %v59, %v111
    %v116 = vsub.f32 %v60, %v111
    %v117 = vsub.f32 %v61, %v111
    %v118 = vsub.f32 %v62, %v111
    %v119 = vsub.f32 %v63, %v111
    %v120 = vsub.f32 %v64, %v111
    %v121 = vsub.f32 %v65, %v111
    %v122 = vsub.f32 %v66, %v111
    %v123 = vsub.f32 %v67, %v111
    %v124 = vsub.f32 %v68, %v111
    %v125 = vsub.f32 %v69, %v111
    %v126 = vsub.f32 %v70, %v111
    %v127 = vsub.f32 %v71, %v111
    %v128 = vlaneseq
    %v129 = vshrl.u32 %v128, 7
    %v130 = vsub.s32 0, %v129
    %v131 = vrot.slane %v72, %v130
    %v132 = vsub.f32 %v72, %v131
    %v133 = vsub.f32 %v73, %v131
    %v134 = vsub.f32 %v74, %v131
    %v135 = vsub.f32 %v75, %v131
    %v136 = vsub.f32 %v76, %v131
    %v137 = vsub.f32 %v77, %v131
    %v138 = vsub.f32 %v78, %v131
    %v139 = vsub.f32 %v79, %v131
    %v140 = vsub.f32 %v80, %v131
    %v141 = vsub.f32 %v81, %v131
    %v142 = vsub.f32 %v82, %v131
    %v143 = vsub.f32 %v83, %v131
    %v144 = vsub.f32 %v84, %v131
    %v145 = vsub.f32 %v85, %v131
    %v146 = vsub.f32 %v86, %v131
    %v147 = vsub.f32 %v87, %v131
    %v148 = vmax.f32 %v39, 1.0
    %v149 = vrcp.pop %v148
    %v150 = vadd.f32 %v92, %v93
    %v151 = vadd.f32 %v150, %v94
    %v152 = vadd.f32 %v151, %v95
    %v153 = vadd.f32 %v152, %v96
    %v154 = vadd.f32 %v153, %v97
    %v155 = vadd.f32 %v154, %v98
    %v156 = vadd.f32 %v155, %v99
    %v157 = vadd.f32 %v156, %v100
    %v158 = vadd.f32 %v157, %v101
    %v159 = vadd.f32 %v158, %v102
    %v160 = vadd.f32 %v159, %v103
    %v161 = vadd.f32 %v160, %v104
    %v162 = vadd.f32 %v161, %v105
    %v163 = vadd.f32 %v162, %v106
    %v164 = vadd.f32 %v163, %v107
    %v165 = vrot.slane %v164, 4
    %v166 = vadd.f32 %v164, %v165
    %v167 = vrot.slane %v166, 2
    %v168 = vadd.f32 %v166, %v167
    %v169 = vrot.slane %v168, 1
    %v170 = vadd.f32 %v168, %v169
    %v171 = vadd.f32 %v112, %v113
    %v172 = vadd.f32 %v171, %v114
    %v173 = vadd.f32 %v172, %v115
    %v174 = vadd.f32 %v173, %v116
    %v175 = vadd.f32 %v174, %v117
    %v176 = vadd.f32 %v175, %v118
    %v177 = vadd.f32 %v176, %v119
    %v178 = vadd.f32 %v177, %v120
    %v179 = vadd.f32 %v178, %v121
    %v180 = vadd.f32 %v179, %v122
    %v181 = vadd.f32 %v180, %v123
    %v182 = vadd.f32 %v181, %v124
    %v183 = vadd.f32 %v182, %v125
    %v184 = vadd.f32 %v183, %v126
    %v185 = vadd.f32 %v184, %v127
    %v186 = vrot.slane %v185, 4
    %v187 = vadd.f32 %v185, %v186
    %v188 = vrot.slane %v187, 2
    %v189 = vadd.f32 %v187, %v188
    %v190 = vrot.slane %v189, 1
    %v191 = vadd.f32 %v189, %v190
    %v192 = vadd.f32 %v132, %v133
    %v193 = vadd.f32 %v192, %v134
    %v194 = vadd.f32 %v193, %v135
    %v195 = vadd.f32 %v194, %v136
    %v196 = vadd.f32 %v195, %v137
    %v197 = vadd.f32 %v196, %v138
    %v198 = vadd.f32 %v197, %v139
    %v199 = vadd.f32 %v198, %v140
    %v200 = vadd.f32 %v199, %v141
    %v201 = vadd.f32 %v200, %v142
    %v202 = vadd.f32 %v201, %v143
    %v203 = vadd.f32 %v202, %v144
    %v204 = vadd.f32 %v203, %v145
    %v205 = vadd.f32 %v204, %v146
    %v206 = vadd.f32 %v205, %v147
    %v207 = vrot.slane %v206, 4
    %v208 = vadd.f32 %v206, %v207
    %v209 = vrot.slane %v208, 2
    %v210 = vadd.f32 %v208, %v209
    %v211 = vrot.slane %v210, 1
    %v212 = vadd.f32 %v210, %v211
    %v213 = vmul.f32 %v170, %v149
    %v214 = vmul.f32 %v191, %v149
    %v215 = vmul.f32 %v212, %v149
    %v216 = vadd.f32 %v40, %v213
    %v217 = vadd.f32 %v56, %v214
    %v218 = vadd.f32 %v72, %v215
    %v219 = vmul.f32 %v92, %v92
    %v220 = vmul.f32 %v93, %v93
    %v221 = vmul.f32 %v94, %v94
    %v222 = vmul.f32 %v95, %v95
    %v223 = vmul.f32 %v96, %v96
    %v224 = vmul.f32 %v97, %v97
    %v225 = vmul.f32 %v98, %v98
    %v226 = vmul.f32 %v99, %v99
    %v227 = vmul.f32 %v100, %v100
    %v228 = vmul.f32 %v101, %v101
    %v229 = vmul.f32 %v102, %v102
    %v230 = vmul.f32 %v103, %v103
    %v231 = vmul.f32 %v104, %v104
    %v232 = vmul.f32 %v105, %v105
    %v233 = vmul.f32 %v106, %v106
    %v234 = vmul.f32 %v107, %v107
    %v235 = vadd.f32 %v219, %v220
    %v236 = vadd.f32 %v235, %v221
    %v237 = vadd.f32 %v236, %v222
    %v238 = vadd.f32 %v237, %v223
    %v239 = vadd.f32 %v238, %v224
    %v240 = vadd.f32 %v239, %v225
    %v241 = vadd.f32 %v240, %v226
    %v242 = vadd.f32 %v241, %v227
    %v243 = vadd.f32 %v242, %v228
    %v244 = vadd.f32 %v243, %v229
    %v245 = vadd.f32 %v244, %v230
    %v246 = vadd.f32 %v245, %v231
    %v247 = vadd.f32 %v246, %v232
    %v248 = vadd.f32 %v247, %v233
    %v249 = vadd.f32 %v248, %v234
    %v250 = vrot.slane %v249, 4
    %v251 = vadd.f32 %v249, %v250
    %v252 = vrot.slane %v251, 2
    %v253 = vadd.f32 %v251, %v252
    %v254 = vrot.slane %v253, 1
    %v255 = vadd.f32 %v253, %v254
    %v256 = vmul.f32 %v92, %v112
    %v257 = vmul.f32 %v93, %v113
    %v258 = vmul.f32 %v94, %v114
    %v259 = vmul.f32 %v95, %v115
    %v260 = vmul.f32 %v96, %v116
    %v261 = vmul.f32 %v97, %v117
    %v262 = vmul.f32 %v98, %v118
    %v263 = vmul.f32 %v99, %v119
    %v264 = vmul.f32 %v100, %v120
    %v265 = vmul.f32 %v101, %v121
    %v266 = vmul.f32 %v102, %v122
    %v267 = vmul.f32 %v103, %v123
    %v268 = vmul.f32 %v104, %v124
    %v269 = vmul.f32 %v105, %v125
    %v270 = vmul.f32 %v106, %v126
    %v271 = vmul.f32 %v107, %v127
    %v272 = vadd.f32 %v256, %v257
    %v273 = vadd.f32 %v272, %v258
    %v274 = vadd.f32 %v273, %v259
    %v275 = vadd.f32 %v274, %v260
    %v276 = vadd.f32 %v275, %v261
    %v277 = vadd.f32 %v276, %v262
    %v278 = vadd.f32 %v277, %v263
    %v279 = vadd.f32 %v278, %v264
    %v280 = vadd.f32 %v279, %v265
    %v281 = vadd.f32 %v280, %v266
    %v282 = vadd.f32 %v281, %v267
    %v283 = vadd.f32 %v282, %v268
    %v284 = vadd.f32 %v283, %v269
    %v285 = vadd.f32 %v284, %v270
    %v286 = vadd.f32 %v285, %v271
    %v287 = vrot.slane %v286, 4
    %v288 = vadd.f32 %v286, %v287
    %v289 = vrot.slane %v288, 2
    %v290 = vadd.f32 %v288, %v289
    %v291 = vrot.slane %v290, 1
    %v292 = vadd.f32 %v290, %v291
    %v293 = vmul.f32 %v92, %v132
    %v294 = vmul.f32 %v93, %v133
    %v295 = vmul.f32 %v94, %v134
    %v296 = vmul.f32 %v95, %v135
    %v297 = vmul.f32 %v96, %v136
    %v298 = vmul.f32 %v97, %v137
    %v299 = vmul.f32 %v98, %v138
    %v300 = vmul.f32 %v99, %v139
    %v301 = vmul.f32 %v100, %v140
    %v302 = vmul.f32 %v101, %v141
    %v303 = vmul.f32 %v102, %v142
    %v304 = vmul.f32 %v103, %v143
    %v305 = vmul.f32 %v104, %v144
    %v306 = vmul.f32 %v105, %v145
    %v307 = vmul.f32 %v106, %v146
    %v308 = vmul.f32 %v107, %v147
    %v309 = vadd.f32 %v293, %v294
    %v310 = vadd.f32 %v309, %v295
    %v311 = vadd.f32 %v310, %v296
    %v312 = vadd.f32 %v311, %v297
    %v313 = vadd.f32 %v312, %v298
    %v314 = vadd.f32 %v313, %v299
    %v315 = vadd.f32 %v314, %v300
    %v316 = vadd.f32 %v315, %v301
    %v317 = vadd.f32 %v316, %v302
    %v318 = vadd.f32 %v317, %v303
    %v319 = vadd.f32 %v318, %v304
    %v320 = vadd.f32 %v319, %v305
    %v321 = vadd.f32 %v320, %v306
    %v322 = vadd.f32 %v321, %v307
    %v323 = vadd.f32 %v322, %v308
    %v324 = vrot.slane %v323, 4
    %v325 = vadd.f32 %v323, %v324
    %v326 = vrot.slane %v325, 2
    %v327 = vadd.f32 %v325, %v326
    %v328 = vrot.slane %v327, 1
    %v329 = vadd.f32 %v327, %v328
    %v330 = vmul.f32 %v112, %v112
    %v331 = vmul.f32 %v113, %v113
    %v332 = vmul.f32 %v114, %v114
    %v333 = vmul.f32 %v115, %v115
    %v334 = vmul.f32 %v116, %v116
    %v335 = vmul.f32 %v117, %v117
    %v336 = vmul.f32 %v118, %v118
    %v337 = vmul.f32 %v119, %v119
    %v338 = vmul.f32 %v120, %v120
    %v339 = vmul.f32 %v121, %v121
    %v340 = vmul.f32 %v122, %v122
    %v341 = vmul.f32 %v123, %v123
    %v342 = vmul.f32 %v124, %v124
    %v343 = vmul.f32 %v125, %v125
    %v344 = vmul.f32 %v126, %v126
    %v345 = vmul.f32 %v127, %v127
    %v346 = vadd.f32 %v330, %v331
    %v347 = vadd.f32 %v346, %v332
    %v348 = vadd.f32 %v347, %v333
    %v349 = vadd.f32 %v348, %v334
    %v350 = vadd.f32 %v349, %v335
    %v351 = vadd.f32 %v350, %v336
    %v352 = vadd.f32 %v351, %v337
    %v353 = vadd.f32 %v352, %v338
    %v354 = vadd.f32 %v353, %v339
    %v355 = vadd.f32 %v354, %v340
    %v356 = vadd.f32 %v355, %v341
    %v357 = vadd.f32 %v356, %v342
    %v358 = vadd.f32 %v357, %v343
    %v359 = vadd.f32 %v358, %v344
    %v360 = vadd.f32 %v359, %v345
    %v361 = vrot.slane %v360, 4
    %v362 = vadd.f32 %v360, %v361
    %v363 = vrot.slane %v362, 2
    %v364 = vadd.f32 %v362, %v363
    %v365 = vrot.slane %v364, 1
    %v366 = vadd.f32 %v364, %v365
    %v367 = vmul.f32 %v112, %v132
    %v368 = vmul.f32 %v113, %v133
    %v369 = vmul.f32 %v114, %v134
    %v370 = vmul.f32 %v115, %v135
    %v371 = vmul.f32 %v116, %v136
    %v372 = vmul.f32 %v117, %v137
    %v373 = vmul.f32 %v118, %v138
    %v374 = vmul.f32 %v119, %v139
    %v375 = vmul.f32 %v120, %v140
    %v376 = vmul.f32 %v121, %v141
    %v377 = vmul.f32 %v122, %v142
    %v378 = vmul.f32 %v123, %v143
    %v379 = vmul.f32 %v124, %v144
    %v380 = vmul.f32 %v125, %v145
    %v381 = vmul.f32 %v126, %v146
    %v382 = vmul.f32 %v127, %v147
    %v383 = vadd.f32 %v367, %v368
    %v384 = vadd.f32 %v383, %v369
    %v385 = vadd.f32 %v384, %v370
    %v386 = vadd.f32 %v385, %v371
    %v387 = vadd.f32 %v386, %v372
    %v388 = vadd.f32 %v387, %v373
    %v389 = vadd.f32 %v388, %v374
    %v390 = vadd.f32 %v389, %v375
    %v391 = vadd.f32 %v390, %v376
    %v392 = vadd.f32 %v391, %v377
    %v393 = vadd.f32 %v392, %v378
    %v394 = vadd.f32 %v393, %v379
    %v395 = vadd.f32 %v394, %v380
    %v396 = vadd.f32 %v395, %v381
    %v397 = vadd.f32 %v396, %v382
    %v398 = vrot.slane %v397, 4
    %v399 = vadd.f32 %v397, %v398
    %v400 = vrot.slane %v399, 2
    %v401 = vadd.f32 %v399, %v400
    %v402 = vrot.slane %v401, 1
    %v403 = vadd.f32 %v401, %v402
    %v404 = vmul.f32 %v132, %v132
    %v405 = vmul.f32 %v133, %v133
    %v406 = vmul.f32 %v134, %v134
    %v407 = vmul.f32 %v135, %v135
    %v408 = vmul.f32 %v136, %v136
    %v409 = vmul.f32 %v137, %v137
    %v410 = vmul.f32 %v138, %v138
    %v411 = vmul.f32 %v139, %v139
    %v412 = vmul.f32 %v140, %v140
    %v413 = vmul.f32 %v141, %v141
    %v414 = vmul.f32 %v142, %v142
    %v415 = vmul.f32 %v143, %v143
    %v416 = vmul.f32 %v144, %v144
    %v417 = vmul.f32 %v145, %v145
    %v418 = vmul.f32 %v146, %v146
    %v419 = vmul.f32 %v147, %v147
    %v420 = vadd.f32 %v404, %v405
    %v421 = vadd.f32 %v420, %v406
    %v422 = vadd.f32 %v421, %v407
    %v423 = vadd.f32 %v422, %v408
    %v424 = vadd.f32 %v423, %v409
    %v425 = vadd.f32 %v424, %v410
    %v426 = vadd.f32 %v425, %v411
    %v427 = vadd.f32 %v426, %v412
    %v428 = vadd.f32 %v427, %v413
    %v429 = vadd.f32 %v428, %v414
    %v430 = vadd.f32 %v429, %v415
    %v431 = vadd.f32 %v430, %v416
    %v432 = vadd.f32 %v431, %v417
    %v433 = vadd.f32 %v432, %v418
    %v434 = vadd.f32 %v433, %v419
    %v435 = vrot.slane %v434, 4
    %v436 = vadd.f32 %v434, %v435
    %v437 = vrot.slane %v436, 2
    %v438 = vadd.f32 %v436, %v437
    %v439 = vrot.slane %v438, 1
    %v440 = vadd.f32 %v438, %v439
    %v441 = vmul.f32 %v39, %v213
    %v442 = vmul.f32 %v441, %v213
    %v443 = vsub.f32 %v255, %v442
    %v444 = vmul.f32 %v441, %v214
    %v445 = vsub.f32 %v292, %v444
    %v446 = vmul.f32 %v441, %v215
    %v447 = vsub.f32 %v329, %v446
    %v448 = vmul.f32 %v39, %v214
    %v449 = vmul.f32 %v448, %v214
    %v450 = vsub.f32 %v366, %v449
    %v451 = vmul.f32 %v448, %v215
    %v452 = vsub.f32 %v403, %v451
    %v453 = vmul.f32 %v39, %v215
    %v454 = vmul.f32 %v453, %v215
    %v455 = vsub.f32 %v440, %v454
    %v456 = vand.u32 2147483647, %v445
    %vm457 = vcmp.gt.f32.partialorder %v456, 1e-30
    %v458 = vsel %vm457, %v445, 1.0
    %v459 = vsub.f32 %v450, %v443
    %v460 = vrcp.pop %v458
    %v461 = vmul.f32 %v460, 0.5
    %v462 = vmul.f32 %v459, %v461
    %v463 = vmax.f32 %v462, -1e+18
    %v464 = vmin.f32 %v463, 1e+18
    %vm465 = vcmp.ge.f32.partialorder %v464, 0.0
    %v466 = vsel %vm465, 1.0, -1.0
    %v467 = vand.u32 2147483647, %v464
    %v468 = vmul.f32 %v464, %v464
    %v469 = vadd.f32 %v468, 1.0
    %v470 = vrsqrt.pop %v469
    %v471 = vmul.f32 %v469, %v470
    %vm472 = vcmp.eq.f32.partialorder %v469, inf
    %v473 = vsel %vm472, %v469, %v471
    %vm474 = vcmp.eq.f32.partialorder %v469, 0.0
    %v475 = vand.u32 %v469, 2147483648
    %v476 = vsel %vm474, %v475, %v473
    %v477 = vadd.f32 %v467, %v476
    %v478 = vrcp.pop %v477
    %v479 = vmul.f32 %v466, %v478
    %v480 = vsel %vm457, %v479, 0.0
    %v481 = vmul.f32 %v480, %v480
    %v482 = vadd.f32 %v481, 1.0
    %v483 = vrsqrt.pop %v482
    %v484 = vmul.f32 %v480, %v483
    %v485 = vmul.f32 %v480, %v445
    %v486 = vsub.f32 %v443, %v485
    %v487 = vadd.f32 %v450, %v485
    %v488 = vmul.f32 %v483, %v447
    %v489 = vmul.f32 %v484, %v452
    %v490 = vsub.f32 %v488, %v489
    %v491 = vmul.f32 %v484, %v447
    %v492 = vmul.f32 %v483, %v452
    %v493 = vadd.f32 %v491, %v492
    %v494 = vmul.f32 %v484, 0.0
    %v495 = vsub.f32 %v483, %v494
    %v496 = vmul.f32 %v483, 0.0
    %v497 = vadd.f32 %v484, %v496
    %v498 = vsub.f32 %v496, %v484
    %v499 = vadd.f32 %v494, %v483
    %v500 = vsub.f32 %v496, %v494
    %v501 = vadd.f32 %v494, %v496
    %v502 = vand.u32 2147483647, %v490
    %vm503 = vcmp.gt.f32.partialorder %v502, 1e-30
    %v504 = vsel %vm503, %v490, 1.0
    %v505 = vsub.f32 %v455, %v486
    %v506 = vrcp.pop %v504
    %v507 = vmul.f32 %v506, 0.5
    %v508 = vmul.f32 %v505, %v507
    %v509 = vmax.f32 %v508, -1e+18
    %v510 = vmin.f32 %v509, 1e+18
    %vm511 = vcmp.ge.f32.partialorder %v510, 0.0
    %v512 = vsel %vm511, 1.0, -1.0
    %v513 = vand.u32 2147483647, %v510
    %v514 = vmul.f32 %v510, %v510
    %v515 = vadd.f32 %v514, 1.0
    %v516 = vrsqrt.pop %v515
    %v517 = vmul.f32 %v515, %v516
    %vm518 = vcmp.eq.f32.partialorder %v515, inf
    %v519 = vsel %vm518, %v515, %v517
    %vm520 = vcmp.eq.f32.partialorder %v515, 0.0
    %v521 = vand.u32 %v515, 2147483648
    %v522 = vsel %vm520, %v521, %v519
    %v523 = vadd.f32 %v513, %v522
    %v524 = vrcp.pop %v523
    %v525 = vmul.f32 %v512, %v524
    %v526 = vsel %vm503, %v525, 0.0
    %v527 = vmul.f32 %v526, %v526
    %v528 = vadd.f32 %v527, 1.0
    %v529 = vrsqrt.pop %v528
    %v530 = vmul.f32 %v526, %v529
    %v531 = vmul.f32 %v526, %v490
    %v532 = vsub.f32 %v486, %v531
    %v533 = vadd.f32 %v455, %v531
    %v534 = vmul.f32 %v529, 0.0
    %v535 = vmul.f32 %v530, %v493
    %v536 = vsub.f32 %v534, %v535
    %v537 = vmul.f32 %v530, 0.0
    %v538 = vmul.f32 %v529, %v493
    %v539 = vadd.f32 %v537, %v538
    %v540 = vmul.f32 %v529, %v495
    %v541 = vsub.f32 %v540, %v537
    %v542 = vmul.f32 %v530, %v495
    %v543 = vadd.f32 %v542, %v534
    %v544 = vmul.f32 %v529, %v498
    %v545 = vsub.f32 %v544, %v537
    %v546 = vmul.f32 %v530, %v498
    %v547 = vadd.f32 %v546, %v534
    %v548 = vmul.f32 %v529, %v500
    %v549 = vsub.f32 %v548, %v530
    %v550 = vmul.f32 %v530, %v500
    %v551 = vadd.f32 %v550, %v529
    %v552 = vand.u32 2147483647, %v539
    %vm553 = vcmp.gt.f32.partialorder %v552, 1e-30
    %v554 = vsel %vm553, %v539, 1.0
    %v555 = vsub.f32 %v533, %v487
    %v556 = vrcp.pop %v554
    %v557 = vmul.f32 %v556, 0.5
    %v558 = vmul.f32 %v555, %v557
    %v559 = vmax.f32 %v558, -1e+18
    %v560 = vmin.f32 %v559, 1e+18
    %vm561 = vcmp.ge.f32.partialorder %v560, 0.0
    %v562 = vsel %vm561, 1.0, -1.0
    %v563 = vand.u32 2147483647, %v560
    %v564 = vmul.f32 %v560, %v560
    %v565 = vadd.f32 %v564, 1.0
    %v566 = vrsqrt.pop %v565
    %v567 = vmul.f32 %v565, %v566
    %vm568 = vcmp.eq.f32.partialorder %v565, inf
    %v569 = vsel %vm568, %v565, %v567
    %vm570 = vcmp.eq.f32.partialorder %v565, 0.0
    %v571 = vand.u32 %v565, 2147483648
    %v572 = vsel %vm570, %v571, %v569
    %v573 = vadd.f32 %v563, %v572
    %v574 = vrcp.pop %v573
    %v575 = vmul.f32 %v562, %v574
    %v576 = vsel %vm553, %v575, 0.0
    %v577 = vmul.f32 %v576, %v576
    %v578 = vadd.f32 %v577, 1.0
    %v579 = vrsqrt.pop %v578
    %v580 = vmul.f32 %v576, %v579
    %v581 = vmul.f32 %v576, %v539
    %v582 = vsub.f32 %v487, %v581
    %v583 = vadd.f32 %v533, %v581
    %v584 = vmul.f32 %v579, %v536
    %v585 = vmul.f32 %v580, 0.0
    %v586 = vsub.f32 %v584, %v585
    %v587 = vmul.f32 %v580, %v536
    %v588 = vmul.f32 %v579, 0.0
    %v589 = vadd.f32 %v587, %v588
    %v590 = vmul.f32 %v579, %v497
    %v591 = vmul.f32 %v580, %v543
    %v592 = vsub.f32 %v590, %v591
    %v593 = vmul.f32 %v580, %v497
    %v594 = vmul.f32 %v579, %v543
    %v595 = vadd.f32 %v593, %v594
    %v596 = vmul.f32 %v579, %v499
    %v597 = vmul.f32 %v580, %v547
    %v598 = vsub.f32 %v596, %v597
    %v599 = vmul.f32 %v580, %v499
    %v600 = vmul.f32 %v579, %v547
    %v601 = vadd.f32 %v599, %v600
    %v602 = vmul.f32 %v579, %v501
    %v603 = vmul.f32 %v580, %v551
    %v604 = vsub.f32 %v602, %v603
    %v605 = vmul.f32 %v580, %v501
    %v606 = vmul.f32 %v579, %v551
    %v607 = vadd.f32 %v605, %v606
    %v608 = vand.u32 2147483647, %v586
    %vm609 = vcmp.gt.f32.partialorder %v608, 1e-30
    %v610 = vsel %vm609, %v586, 1.0
    %v611 = vsub.f32 %v582, %v532
    %v612 = vrcp.pop %v610
    %v613 = vmul.f32 %v612, 0.5
    %v614 = vmul.f32 %v611, %v613
    %v615 = vmax.f32 %v614, -1e+18
    %v616 = vmin.f32 %v615, 1e+18
    %vm617 = vcmp.ge.f32.partialorder %v616, 0.0
    %v618 = vsel %vm617, 1.0, -1.0
    %v619 = vand.u32 2147483647, %v616
    %v620 = vmul.f32 %v616, %v616
    %v621 = vadd.f32 %v620, 1.0
    %v622 = vrsqrt.pop %v621
    %v623 = vmul.f32 %v621, %v622
    %vm624 = vcmp.eq.f32.partialorder %v621, inf
    %v625 = vsel %vm624, %v621, %v623
    %vm626 = vcmp.eq.f32.partialorder %v621, 0.0
    %v627 = vand.u32 %v621, 2147483648
    %v628 = vsel %vm626, %v627, %v625
    %v629 = vadd.f32 %v619, %v628
    %v630 = vrcp.pop %v629
    %v631 = vmul.f32 %v618, %v630
    %v632 = vsel %vm609, %v631, 0.0
    %v633 = vmul.f32 %v632, %v632
    %v634 = vadd.f32 %v633, 1.0
    %v635 = vrsqrt.pop %v634
    %v636 = vmul.f32 %v632, %v635
    %v637 = vmul.f32 %v632, %v586
    %v638 = vsub.f32 %v532, %v637
    %v639 = vadd.f32 %v582, %v637
    %v640 = vmul.f32 %v635, %v589
    %v641 = vmul.f32 %v636, 0.0
    %v642 = vsub.f32 %v640, %v641
    %v643 = vmul.f32 %v636, %v589
    %v644 = vmul.f32 %v635, 0.0
    %v645 = vadd.f32 %v643, %v644
    %v646 = vmul.f32 %v635, %v541
    %v647 = vmul.f32 %v636, %v592
    %v648 = vsub.f32 %v646, %v647
    %v649 = vmul.f32 %v636, %v541
    %v650 = vmul.f32 %v635, %v592
    %v651 = vadd.f32 %v649, %v650
    %v652 = vmul.f32 %v635, %v545
    %v653 = vmul.f32 %v636, %v598
    %v654 = vsub.f32 %v652, %v653
    %v655 = vmul.f32 %v636, %v545
    %v656 = vmul.f32 %v635, %v598
    %v657 = vadd.f32 %v655, %v656
    %v658 = vmul.f32 %v635, %v549
    %v659 = vmul.f32 %v636, %v604
    %v660 = vsub.f32 %v658, %v659
    %v661 = vmul.f32 %v636, %v549
    %v662 = vmul.f32 %v635, %v604
    %v663 = vadd.f32 %v661, %v662
    %v664 = vand.u32 2147483647, %v642
    %vm665 = vcmp.gt.f32.partialorder %v664, 1e-30
    %v666 = vsel %vm665, %v642, 1.0
    %v667 = vsub.f32 %v583, %v638
    %v668 = vrcp.pop %v666
    %v669 = vmul.f32 %v668, 0.5
    %v670 = vmul.f32 %v667, %v669
    %v671 = vmax.f32 %v670, -1e+18
    %v672 = vmin.f32 %v671, 1e+18
    %vm673 = vcmp.ge.f32.partialorder %v672, 0.0
    %v674 = vsel %vm673, 1.0, -1.0
    %v675 = vand.u32 2147483647, %v672
    %v676 = vmul.f32 %v672, %v672
    %v677 = vadd.f32 %v676, 1.0
    %v678 = vrsqrt.pop %v677
    %v679 = vmul.f32 %v677, %v678
    %vm680 = vcmp.eq.f32.partialorder %v677, inf
    %v681 = vsel %vm680, %v677, %v679
    %vm682 = vcmp.eq.f32.partialorder %v677, 0.0
    %v683 = vand.u32 %v677, 2147483648
    %v684 = vsel %vm682, %v683, %v681
    %v685 = vadd.f32 %v675, %v684
    %v686 = vrcp.pop %v685
    %v687 = vmul.f32 %v674, %v686
    %v688 = vsel %vm665, %v687, 0.0
    %v689 = vmul.f32 %v688, %v688
    %v690 = vadd.f32 %v689, 1.0
    %v691 = vrsqrt.pop %v690
    %v692 = vmul.f32 %v688, %v691
    %v693 = vmul.f32 %v688, %v642
    %v694 = vsub.f32 %v638, %v693
    %v695 = vadd.f32 %v583, %v693
    %v696 = vmul.f32 %v691, 0.0
    %v697 = vmul.f32 %v692, %v645
    %v698 = vsub.f32 %v696, %v697
    %v699 = vmul.f32 %v692, 0.0
    %v700 = vmul.f32 %v691, %v645
    %v701 = vadd.f32 %v699, %v700
    %v702 = vmul.f32 %v691, %v648
    %v703 = vmul.f32 %v692, %v595
    %v704 = vsub.f32 %v702, %v703
    %v705 = vmul.f32 %v692, %v648
    %v706 = vmul.f32 %v691, %v595
    %v707 = vadd.f32 %v705, %v706
    %v708 = vmul.f32 %v691, %v654
    %v709 = vmul.f32 %v692, %v601
    %v710 = vsub.f32 %v708, %v709
    %v711 = vmul.f32 %v692, %v654
    %v712 = vmul.f32 %v691, %v601
    %v713 = vadd.f32 %v711, %v712
    %v714 = vmul.f32 %v691, %v660
    %v715 = vmul.f32 %v692, %v607
    %v716 = vsub.f32 %v714, %v715
    %v717 = vmul.f32 %v692, %v660
    %v718 = vmul.f32 %v691, %v607
    %v719 = vadd.f32 %v717, %v718
    %v720 = vand.u32 2147483647, %v701
    %vm721 = vcmp.gt.f32.partialorder %v720, 1e-30
    %v722 = vsel %vm721, %v701, 1.0
    %v723 = vsub.f32 %v695, %v639
    %v724 = vrcp.pop %v722
    %v725 = vmul.f32 %v724, 0.5
    %v726 = vmul.f32 %v723, %v725
    %v727 = vmax.f32 %v726, -1e+18
    %v728 = vmin.f32 %v727, 1e+18
    %vm729 = vcmp.ge.f32.partialorder %v728, 0.0
    %v730 = vsel %vm729, 1.0, -1.0
    %v731 = vand.u32 2147483647, %v728
    %v732 = vmul.f32 %v728, %v728
    %v733 = vadd.f32 %v732, 1.0
    %v734 = vrsqrt.pop %v733
    %v735 = vmul.f32 %v733, %v734
    %vm736 = vcmp.eq.f32.partialorder %v733, inf
    %v737 = vsel %vm736, %v733, %v735
    %vm738 = vcmp.eq.f32.partialorder %v733, 0.0
    %v739 = vand.u32 %v733, 2147483648
    %v740 = vsel %vm738, %v739, %v737
    %v741 = vadd.f32 %v731, %v740
    %v742 = vrcp.pop %v741
    %v743 = vmul.f32 %v730, %v742
    %v744 = vsel %vm721, %v743, 0.0
    %v745 = vmul.f32 %v744, %v744
    %v746 = vadd.f32 %v745, 1.0
    %v747 = vrsqrt.pop %v746
    %v748 = vmul.f32 %v744, %v747
    %v749 = vmul.f32 %v744, %v701
    %v750 = vsub.f32 %v639, %v749
    %v751 = vadd.f32 %v695, %v749
    %v752 = vmul.f32 %v747, %v698
    %v753 = vmul.f32 %v748, 0.0
    %v754 = vsub.f32 %v752, %v753
    %v755 = vmul.f32 %v748, %v698
    %v756 = vmul.f32 %v747, 0.0
    %v757 = vadd.f32 %v755, %v756
    %v758 = vmul.f32 %v747, %v651
    %v759 = vmul.f32 %v748, %v707
    %v760 = vsub.f32 %v758, %v759
    %v761 = vmul.f32 %v748, %v651
    %v762 = vmul.f32 %v747, %v707
    %v763 = vadd.f32 %v761, %v762
    %v764 = vmul.f32 %v747, %v657
    %v765 = vmul.f32 %v748, %v713
    %v766 = vsub.f32 %v764, %v765
    %v767 = vmul.f32 %v748, %v657
    %v768 = vmul.f32 %v747, %v713
    %v769 = vadd.f32 %v767, %v768
    %v770 = vmul.f32 %v747, %v663
    %v771 = vmul.f32 %v748, %v719
    %v772 = vsub.f32 %v770, %v771
    %v773 = vmul.f32 %v748, %v663
    %v774 = vmul.f32 %v747, %v719
    %v775 = vadd.f32 %v773, %v774
    %v776 = vand.u32 2147483647, %v754
    %vm777 = vcmp.gt.f32.partialorder %v776, 1e-30
    %v778 = vsel %vm777, %v754, 1.0
    %v779 = vsub.f32 %v750, %v694
    %v780 = vrcp.pop %v778
    %v781 = vmul.f32 %v780, 0.5
    %v782 = vmul.f32 %v779, %v781
    %v783 = vmax.f32 %v782, -1e+18
    %v784 = vmin.f32 %v783, 1e+18
    %vm785 = vcmp.ge.f32.partialorder %v784, 0.0
    %v786 = vsel %vm785, 1.0, -1.0
    %v787 = vand.u32 2147483647, %v784
    %v788 = vmul.f32 %v784, %v784
    %v789 = vadd.f32 %v788, 1.0
    %v790 = vrsqrt.pop %v789
    %v791 = vmul.f32 %v789, %v790
    %vm792 = vcmp.eq.f32.partialorder %v789, inf
    %v793 = vsel %vm792, %v789, %v791
    %vm794 = vcmp.eq.f32.partialorder %v789, 0.0
    %v795 = vand.u32 %v789, 2147483648
    %v796 = vsel %vm794, %v795, %v793
    %v797 = vadd.f32 %v787, %v796
    %v798 = vrcp.pop %v797
    %v799 = vmul.f32 %v786, %v798
    %v800 = vsel %vm777, %v799, 0.0
    %v801 = vmul.f32 %v800, %v800
    %v802 = vadd.f32 %v801, 1.0
    %v803 = vrsqrt.pop %v802
    %v804 = vmul.f32 %v800, %v803
    %v805 = vmul.f32 %v800, %v754
    %v806 = vsub.f32 %v694, %v805
    %v807 = vadd.f32 %v750, %v805
    %v808 = vmul.f32 %v803, %v757
    %v809 = vmul.f32 %v804, 0.0
    %v810 = vsub.f32 %v808, %v809
    %v811 = vmul.f32 %v804, %v757
    %v812 = vmul.f32 %v803, 0.0
    %v813 = vadd.f32 %v811, %v812
    %v814 = vmul.f32 %v803, %v704
    %v815 = vmul.f32 %v804, %v760
    %v816 = vsub.f32 %v814, %v815
    %v817 = vmul.f32 %v804, %v704
    %v818 = vmul.f32 %v803, %v760
    %v819 = vadd.f32 %v817, %v818
    %v820 = vmul.f32 %v803, %v710
    %v821 = vmul.f32 %v804, %v766
    %v822 = vsub.f32 %v820, %v821
    %v823 = vmul.f32 %v804, %v710
    %v824 = vmul.f32 %v803, %v766
    %v825 = vadd.f32 %v823, %v824
    %v826 = vmul.f32 %v803, %v716
    %v827 = vmul.f32 %v804, %v772
    %v828 = vsub.f32 %v826, %v827
    %v829 = vmul.f32 %v804, %v716
    %v830 = vmul.f32 %v803, %v772
    %v831 = vadd.f32 %v829, %v830
    %v832 = vand.u32 2147483647, %v810
    %vm833 = vcmp.gt.f32.partialorder %v832, 1e-30
    %v834 = vsel %vm833, %v810, 1.0
    %v835 = vsub.f32 %v751, %v806
    %v836 = vrcp.pop %v834
    %v837 = vmul.f32 %v836, 0.5
    %v838 = vmul.f32 %v835, %v837
    %v839 = vmax.f32 %v838, -1e+18
    %v840 = vmin.f32 %v839, 1e+18
    %vm841 = vcmp.ge.f32.partialorder %v840, 0.0
    %v842 = vsel %vm841, 1.0, -1.0
    %v843 = vand.u32 2147483647, %v840
    %v844 = vmul.f32 %v840, %v840
    %v845 = vadd.f32 %v844, 1.0
    %v846 = vrsqrt.pop %v845
    %v847 = vmul.f32 %v845, %v846
    %vm848 = vcmp.eq.f32.partialorder %v845, inf
    %v849 = vsel %vm848, %v845, %v847
    %vm850 = vcmp.eq.f32.partialorder %v845, 0.0
    %v851 = vand.u32 %v845, 2147483648
    %v852 = vsel %vm850, %v851, %v849
    %v853 = vadd.f32 %v843, %v852
    %v854 = vrcp.pop %v853
    %v855 = vmul.f32 %v842, %v854
    %v856 = vsel %vm833, %v855, 0.0
    %v857 = vmul.f32 %v856, %v856
    %v858 = vadd.f32 %v857, 1.0
    %v859 = vrsqrt.pop %v858
    %v860 = vmul.f32 %v856, %v859
    %v861 = vmul.f32 %v856, %v810
    %v862 = vsub.f32 %v806, %v861
    %v863 = vadd.f32 %v751, %v861
    %v864 = vmul.f32 %v859, 0.0
    %v865 = vmul.f32 %v860, %v813
    %v866 = vsub.f32 %v864, %v865
    %v867 = vmul.f32 %v860, 0.0
    %v868 = vmul.f32 %v859, %v813
    %v869 = vadd.f32 %v867, %v868
    %v870 = vmul.f32 %v859, %v816
    %v871 = vmul.f32 %v860, %v763
    %v872 = vsub.f32 %v870, %v871
    %v873 = vmul.f32 %v860, %v816
    %v874 = vmul.f32 %v859, %v763
    %v875 = vadd.f32 %v873, %v874
    %v876 = vmul.f32 %v859, %v822
    %v877 = vmul.f32 %v860, %v769
    %v878 = vsub.f32 %v876, %v877
    %v879 = vmul.f32 %v860, %v822
    %v880 = vmul.f32 %v859, %v769
    %v881 = vadd.f32 %v879, %v880
    %v882 = vmul.f32 %v859, %v828
    %v883 = vmul.f32 %v860, %v775
    %v884 = vsub.f32 %v882, %v883
    %v885 = vmul.f32 %v860, %v828
    %v886 = vmul.f32 %v859, %v775
    %v887 = vadd.f32 %v885, %v886
    %v888 = vand.u32 2147483647, %v869
    %vm889 = vcmp.gt.f32.partialorder %v888, 1e-30
    %v890 = vsel %vm889, %v869, 1.0
    %v891 = vsub.f32 %v863, %v807
    %v892 = vrcp.pop %v890
    %v893 = vmul.f32 %v892, 0.5
    %v894 = vmul.f32 %v891, %v893
    %v895 = vmax.f32 %v894, -1e+18
    %v896 = vmin.f32 %v895, 1e+18
    %vm897 = vcmp.ge.f32.partialorder %v896, 0.0
    %v898 = vsel %vm897, 1.0, -1.0
    %v899 = vand.u32 2147483647, %v896
    %v900 = vmul.f32 %v896, %v896
    %v901 = vadd.f32 %v900, 1.0
    %v902 = vrsqrt.pop %v901
    %v903 = vmul.f32 %v901, %v902
    %vm904 = vcmp.eq.f32.partialorder %v901, inf
    %v905 = vsel %vm904, %v901, %v903
    %vm906 = vcmp.eq.f32.partialorder %v901, 0.0
    %v907 = vand.u32 %v901, 2147483648
    %v908 = vsel %vm906, %v907, %v905
    %v909 = vadd.f32 %v899, %v908
    %v910 = vrcp.pop %v909
    %v911 = vmul.f32 %v898, %v910
    %v912 = vsel %vm889, %v911, 0.0
    %v913 = vmul.f32 %v912, %v912
    %v914 = vadd.f32 %v913, 1.0
    %v915 = vrsqrt.pop %v914
    %v916 = vmul.f32 %v912, %v915
    %v917 = vmul.f32 %v912, %v869
    %v918 = vsub.f32 %v807, %v917
    %v919 = vadd.f32 %v863, %v917
    %v920 = vmul.f32 %v915, %v866
    %v921 = vmul.f32 %v916, 0.0
    %v922 = vsub.f32 %v920, %v921
    %v923 = vmul.f32 %v916, %v866
    %v924 = vmul.f32 %v915, 0.0
    %v925 = vadd.f32 %v923, %v924
    %v926 = vmul.f32 %v915, %v819
    %v927 = vmul.f32 %v916, %v875
    %v928 = vsub.f32 %v926, %v927
    %v929 = vmul.f32 %v916, %v819
    %v930 = vmul.f32 %v915, %v875
    %v931 = vadd.f32 %v929, %v930
    %v932 = vmul.f32 %v915, %v825
    %v933 = vmul.f32 %v916, %v881
    %v934 = vsub.f32 %v932, %v933
    %v935 = vmul.f32 %v916, %v825
    %v936 = vmul.f32 %v915, %v881
    %v937 = vadd.f32 %v935, %v936
    %v938 = vmul.f32 %v915, %v831
    %v939 = vmul.f32 %v916, %v887
    %v940 = vsub.f32 %v938, %v939
    %v941 = vmul.f32 %v916, %v831
    %v942 = vmul.f32 %v915, %v887
    %v943 = vadd.f32 %v941, %v942
    %v944 = vand.u32 2147483647, %v922
    %vm945 = vcmp.gt.f32.partialorder %v944, 1e-30
    %v946 = vsel %vm945, %v922, 1.0
    %v947 = vsub.f32 %v918, %v862
    %v948 = vrcp.pop %v946
    %v949 = vmul.f32 %v948, 0.5
    %v950 = vmul.f32 %v947, %v949
    %v951 = vmax.f32 %v950, -1e+18
    %v952 = vmin.f32 %v951, 1e+18
    %vm953 = vcmp.ge.f32.partialorder %v952, 0.0
    %v954 = vsel %vm953, 1.0, -1.0
    %v955 = vand.u32 2147483647, %v952
    %v956 = vmul.f32 %v952, %v952
    %v957 = vadd.f32 %v956, 1.0
    %v958 = vrsqrt.pop %v957
    %v959 = vmul.f32 %v957, %v958
    %vm960 = vcmp.eq.f32.partialorder %v957, inf
    %v961 = vsel %vm960, %v957, %v959
    %vm962 = vcmp.eq.f32.partialorder %v957, 0.0
    %v963 = vand.u32 %v957, 2147483648
    %v964 = vsel %vm962, %v963, %v961
    %v965 = vadd.f32 %v955, %v964
    %v966 = vrcp.pop %v965
    %v967 = vmul.f32 %v954, %v966
    %v968 = vsel %vm945, %v967, 0.0
    %v969 = vmul.f32 %v968, %v968
    %v970 = vadd.f32 %v969, 1.0
    %v971 = vrsqrt.pop %v970
    %v972 = vmul.f32 %v968, %v971
    %v973 = vmul.f32 %v968, %v922
    %v974 = vsub.f32 %v862, %v973
    %v975 = vadd.f32 %v918, %v973
    %v976 = vmul.f32 %v971, %v925
    %v977 = vmul.f32 %v972, 0.0
    %v978 = vsub.f32 %v976, %v977
    %v979 = vmul.f32 %v972, %v925
    %v980 = vmul.f32 %v971, 0.0
    %v981 = vadd.f32 %v979, %v980
    %v982 = vmul.f32 %v971, %v872
    %v983 = vmul.f32 %v972, %v928
    %v984 = vsub.f32 %v982, %v983
    %v985 = vmul.f32 %v972, %v872
    %v986 = vmul.f32 %v971, %v928
    %v987 = vadd.f32 %v985, %v986
    %v988 = vmul.f32 %v971, %v878
    %v989 = vmul.f32 %v972, %v934
    %v990 = vsub.f32 %v988, %v989
    %v991 = vmul.f32 %v972, %v878
    %v992 = vmul.f32 %v971, %v934
    %v993 = vadd.f32 %v991, %v992
    %v994 = vmul.f32 %v971, %v884
    %v995 = vmul.f32 %v972, %v940
    %v996 = vsub.f32 %v994, %v995
    %v997 = vmul.f32 %v972, %v884
    %v998 = vmul.f32 %v971, %v940
    %v999 = vadd.f32 %v997, %v998
    %v1000 = vand.u32 2147483647, %v978
    %vm1001 = vcmp.gt.f32.partialorder %v1000, 1e-30
    %v1002 = vsel %vm1001, %v978, 1.0
    %v1003 = vsub.f32 %v919, %v974
    %v1004 = vrcp.pop %v1002
    %v1005 = vmul.f32 %v1004, 0.5
    %v1006 = vmul.f32 %v1003, %v1005
    %v1007 = vmax.f32 %v1006, -1e+18
    %v1008 = vmin.f32 %v1007, 1e+18
    %vm1009 = vcmp.ge.f32.partialorder %v1008, 0.0
    %v1010 = vsel %vm1009, 1.0, -1.0
    %v1011 = vand.u32 2147483647, %v1008
    %v1012 = vmul.f32 %v1008, %v1008
    %v1013 = vadd.f32 %v1012, 1.0
    %v1014 = vrsqrt.pop %v1013
    %v1015 = vmul.f32 %v1013, %v1014
    %vm1016 = vcmp.eq.f32.partialorder %v1013, inf
    %v1017 = vsel %vm1016, %v1013, %v1015
    %vm1018 = vcmp.eq.f32.partialorder %v1013, 0.0
    %v1019 = vand.u32 %v1013, 2147483648
    %v1020 = vsel %vm1018, %v1019, %v1017
    %v1021 = vadd.f32 %v1011, %v1020
    %v1022 = vrcp.pop %v1021
    %v1023 = vmul.f32 %v1010, %v1022
    %v1024 = vsel %vm1001, %v1023, 0.0
    %v1025 = vmul.f32 %v1024, %v1024
    %v1026 = vadd.f32 %v1025, 1.0
    %v1027 = vrsqrt.pop %v1026
    %v1028 = vmul.f32 %v1024, %v1027
    %v1029 = vmul.f32 %v1024, %v978
    %v1030 = vsub.f32 %v974, %v1029
    %v1031 = vadd.f32 %v919, %v1029
    %v1032 = vmul.f32 %v1028, 0.0
    %v1033 = vmul.f32 %v1027, %v981
    %v1034 = vadd.f32 %v1032, %v1033
    %v1035 = vmul.f32 %v1027, %v984
    %v1036 = vmul.f32 %v1028, %v931
    %v1037 = vsub.f32 %v1035, %v1036
    %v1038 = vmul.f32 %v1028, %v984
    %v1039 = vmul.f32 %v1027, %v931
    %v1040 = vadd.f32 %v1038, %v1039
    %v1041 = vmul.f32 %v1027, %v990
    %v1042 = vmul.f32 %v1028, %v937
    %v1043 = vsub.f32 %v1041, %v1042
    %v1044 = vmul.f32 %v1028, %v990
    %v1045 = vmul.f32 %v1027, %v937
    %v1046 = vadd.f32 %v1044, %v1045
    %v1047 = vmul.f32 %v1027, %v996
    %v1048 = vmul.f32 %v1028, %v943
    %v1049 = vsub.f32 %v1047, %v1048
    %v1050 = vmul.f32 %v1028, %v996
    %v1051 = vmul.f32 %v1027, %v943
    %v1052 = vadd.f32 %v1050, %v1051
    %v1053 = vand.u32 2147483647, %v1034
    %vm1054 = vcmp.gt.f32.partialorder %v1053, 1e-30
    %v1055 = vsel %vm1054, %v1034, 1.0
    %v1056 = vsub.f32 %v1031, %v975
    %v1057 = vrcp.pop %v1055
    %v1058 = vmul.f32 %v1057, 0.5
    %v1059 = vmul.f32 %v1056, %v1058
    %v1060 = vmax.f32 %v1059, -1e+18
    %v1061 = vmin.f32 %v1060, 1e+18
    %vm1062 = vcmp.ge.f32.partialorder %v1061, 0.0
    %v1063 = vsel %vm1062, 1.0, -1.0
    %v1064 = vand.u32 2147483647, %v1061
    %v1065 = vmul.f32 %v1061, %v1061
    %v1066 = vadd.f32 %v1065, 1.0
    %v1067 = vrsqrt.pop %v1066
    %v1068 = vmul.f32 %v1066, %v1067
    %vm1069 = vcmp.eq.f32.partialorder %v1066, inf
    %v1070 = vsel %vm1069, %v1066, %v1068
    %vm1071 = vcmp.eq.f32.partialorder %v1066, 0.0
    %v1072 = vand.u32 %v1066, 2147483648
    %v1073 = vsel %vm1071, %v1072, %v1070
    %v1074 = vadd.f32 %v1064, %v1073
    %v1075 = vrcp.pop %v1074
    %v1076 = vmul.f32 %v1063, %v1075
    %v1077 = vsel %vm1054, %v1076, 0.0
    %v1078 = vmul.f32 %v1077, %v1077
    %v1079 = vadd.f32 %v1078, 1.0
    %v1080 = vrsqrt.pop %v1079
    %v1081 = vmul.f32 %v1077, %v1080
    %v1082 = vmul.f32 %v1077, %v1034
    %v1083 = vsub.f32 %v975, %v1082
    %v1084 = vadd.f32 %v1031, %v1082
    %v1085 = vmul.f32 %v1080, %v987
    %v1086 = vmul.f32 %v1081, %v1040
    %v1087 = vsub.f32 %v1085, %v1086
    %v1088 = vmul.f32 %v1081, %v987
    %v1089 = vmul.f32 %v1080, %v1040
    %v1090 = vadd.f32 %v1088, %v1089
    %v1091 = vmul.f32 %v1080, %v993
    %v1092 = vmul.f32 %v1081, %v1046
    %v1093 = vsub.f32 %v1091, %v1092
    %v1094 = vmul.f32 %v1081, %v993
    %v1095 = vmul.f32 %v1080, %v1046
    %v1096 = vadd.f32 %v1094, %v1095
    %v1097 = vmul.f32 %v1080, %v999
    %v1098 = vmul.f32 %v1081, %v1052
    %v1099 = vsub.f32 %v1097, %v1098
    %v1100 = vmul.f32 %v1081, %v999
    %v1101 = vmul.f32 %v1080, %v1052
    %v1102 = vadd.f32 %v1100, %v1101
    %v1103 = vmax.f32 %v1030, %v1083
    %v1104 = vmax.f32 %v1103, %v1084
    %v1105 = vmin.f32 %v1030, %v1083
    %v1106 = vmin.f32 %v1105, %v1084
    %v1107 = vadd.f32 %v1030, %v1083
    %v1108 = vadd.f32 %v1107, %v1084
    %v1109 = vsub.f32 %v1108, %v1104
    %v1110 = vsub.f32 %v1109, %v1106
    %vm1111 = vcmp.ge.f32.partialorder %v1030, %v1083
    %vm1112 = vcmp.ge.f32.partialorder %v1030, %v1084
    %vm1113 = vmand %vm1111, %vm1112
    %vm1114 = vmxor %vm1113, 1
    %vm1115 = vcmp.ge.f32.partialorder %v1083, %v1084
    %vm1116 = vmand %vm1114, %vm1115
    %v1117 = vsel %vm1116, %v1087, %v1090
    %v1118 = vsel %vm1113, %v1037, %v1117
    %v1119 = vsel %vm1116, %v1093, %v1096
    %v1120 = vsel %vm1113, %v1043, %v1119
    %v1121 = vsel %vm1116, %v1099, %v1102
    %v1122 = vsel %vm1113, %v1049, %v1121
    %v1123 = vlaneseq
    %v1124 = vshrl.u32 %v1123, 7
    %v1125 = vadd.s32 %v1124, 8
    %v1126 = vadd.s32 %v1124, 16
    %v1127 = vadd.s32 %v1124, 24
    %v1128 = vadd.s32 %v1124, 32
    %v1129 = vadd.s32 %v1124, 40
    %v1130 = vadd.s32 %v1124, 48
    %v1131 = vadd.s32 %v1124, 56
    %v1132 = vadd.s32 %v1124, 64
    %v1133 = vadd.s32 %v1124, 72
    %v1134 = vadd.s32 %v1124, 80
    %v1135 = vadd.s32 %v1124, 88
    %v1136 = vadd.s32 %v1124, 96
    %v1137 = vadd.s32 %v1124, 104
    %v1138 = vadd.s32 %v1124, 112
    %v1139 = vadd.s32 %v1124, 120
    %v1140 = vlaneseq
    %v1141 = vshrl.u32 %v1140, 7
    %v1142 = vsub.s32 0, %v1141
    %v1143 = vrot.slane %v38, %v1142
    %vm1144 = vcmp.lt.s32.totalorder %v1124, %v1143
    %vm1145 = vcmp.lt.s32.totalorder %v1125, %v1143
    %vm1146 = vcmp.lt.s32.totalorder %v1126, %v1143
    %vm1147 = vcmp.lt.s32.totalorder %v1127, %v1143
    %vm1148 = vcmp.lt.s32.totalorder %v1128, %v1143
    %vm1149 = vcmp.lt.s32.totalorder %v1129, %v1143
    %vm1150 = vcmp.lt.s32.totalorder %v1130, %v1143
    %vm1151 = vcmp.lt.s32.totalorder %v1131, %v1143
    %vm1152 = vcmp.lt.s32.totalorder %v1132, %v1143
    %vm1153 = vcmp.lt.s32.totalorder %v1133, %v1143
    %vm1154 = vcmp.lt.s32.totalorder %v1134, %v1143
    %vm1155 = vcmp.lt.s32.totalorder %v1135, %v1143
    %vm1156 = vcmp.lt.s32.totalorder %v1136, %v1143
    %vm1157 = vcmp.lt.s32.totalorder %v1137, %v1143
    %vm1158 = vcmp.lt.s32.totalorder %v1138, %v1143
    %vm1159 = vcmp.lt.s32.totalorder %v1139, %v1143
    %v1160 = vsel %vm1144, 1.0, 0.0
    %v1161 = vsel %vm1145, 1.0, 0.0
    %v1162 = vsel %vm1146, 1.0, 0.0
    %v1163 = vsel %vm1147, 1.0, 0.0
    %v1164 = vsel %vm1148, 1.0, 0.0
    %v1165 = vsel %vm1149, 1.0, 0.0
    %v1166 = vsel %vm1150, 1.0, 0.0
    %v1167 = vsel %vm1151, 1.0, 0.0
    %v1168 = vsel %vm1152, 1.0, 0.0
    %v1169 = vsel %vm1153, 1.0, 0.0
    %v1170 = vsel %vm1154, 1.0, 0.0
    %v1171 = vsel %vm1155, 1.0, 0.0
    %v1172 = vsel %vm1156, 1.0, 0.0
    %v1173 = vsel %vm1157, 1.0, 0.0
    %v1174 = vsel %vm1158, 1.0, 0.0
    %v1175 = vsel %vm1159, 1.0, 0.0
    %v1176 = vlaneseq
    %v1177 = vshrl.u32 %v1176, 7
    %v1178 = vsub.s32 0, %v1177
    %v1179 = vrot.slane %v213, %v1178
    %v1180 = vsub.f32 %v92, %v1179
    %v1181 = vsub.f32 %v93, %v1179
    %v1182 = vsub.f32 %v94, %v1179
    %v1183 = vsub.f32 %v95, %v1179
    %v1184 = vsub.f32 %v96, %v1179
    %v1185 = vsub.f32 %v97, %v1179
    %v1186 = vsub.f32 %v98, %v1179
    %v1187 = vsub.f32 %v99, %v1179
    %v1188 = vsub.f32 %v100, %v1179
    %v1189 = vsub.f32 %v101, %v1179
    %v1190 = vsub.f32 %v102, %v1179
    %v1191 = vsub.f32 %v103, %v1179
    %v1192 = vsub.f32 %v104, %v1179
    %v1193 = vsub.f32 %v105, %v1179
    %v1194 = vsub.f32 %v106, %v1179
    %v1195 = vsub.f32 %v107, %v1179
    %v1196 = vlaneseq
    %v1197 = vshrl.u32 %v1196, 7
    %v1198 = vsub.s32 0, %v1197
    %v1199 = vrot.slane %v214, %v1198
    %v1200 = vsub.f32 %v112, %v1199
    %v1201 = vsub.f32 %v113, %v1199
    %v1202 = vsub.f32 %v114, %v1199
    %v1203 = vsub.f32 %v115, %v1199
    %v1204 = vsub.f32 %v116, %v1199
    %v1205 = vsub.f32 %v117, %v1199
    %v1206 = vsub.f32 %v118, %v1199
    %v1207 = vsub.f32 %v119, %v1199
    %v1208 = vsub.f32 %v120, %v1199
    %v1209 = vsub.f32 %v121, %v1199
    %v1210 = vsub.f32 %v122, %v1199
    %v1211 = vsub.f32 %v123, %v1199
    %v1212 = vsub.f32 %v124, %v1199
    %v1213 = vsub.f32 %v125, %v1199
    %v1214 = vsub.f32 %v126, %v1199
    %v1215 = vsub.f32 %v127, %v1199
    %v1216 = vlaneseq
    %v1217 = vshrl.u32 %v1216, 7
    %v1218 = vsub.s32 0, %v1217
    %v1219 = vrot.slane %v215, %v1218
    %v1220 = vsub.f32 %v132, %v1219
    %v1221 = vsub.f32 %v133, %v1219
    %v1222 = vsub.f32 %v134, %v1219
    %v1223 = vsub.f32 %v135, %v1219
    %v1224 = vsub.f32 %v136, %v1219
    %v1225 = vsub.f32 %v137, %v1219
    %v1226 = vsub.f32 %v138, %v1219
    %v1227 = vsub.f32 %v139, %v1219
    %v1228 = vsub.f32 %v140, %v1219
    %v1229 = vsub.f32 %v141, %v1219
    %v1230 = vsub.f32 %v142, %v1219
    %v1231 = vsub.f32 %v143, %v1219
    %v1232 = vsub.f32 %v144, %v1219
    %v1233 = vsub.f32 %v145, %v1219
    %v1234 = vsub.f32 %v146, %v1219
    %v1235 = vsub.f32 %v147, %v1219
    %v1236 = vlaneseq
    %v1237 = vshrl.u32 %v1236, 7
    %v1238 = vsub.s32 0, %v1237
    %v1239 = vrot.slane %v1118, %v1238
    %v1240 = vmul.f32 %v1180, %v1239
    %v1241 = vmul.f32 %v1181, %v1239
    %v1242 = vmul.f32 %v1182, %v1239
    %v1243 = vmul.f32 %v1183, %v1239
    %v1244 = vmul.f32 %v1184, %v1239
    %v1245 = vmul.f32 %v1185, %v1239
    %v1246 = vmul.f32 %v1186, %v1239
    %v1247 = vmul.f32 %v1187, %v1239
    %v1248 = vmul.f32 %v1188, %v1239
    %v1249 = vmul.f32 %v1189, %v1239
    %v1250 = vmul.f32 %v1190, %v1239
    %v1251 = vmul.f32 %v1191, %v1239
    %v1252 = vmul.f32 %v1192, %v1239
    %v1253 = vmul.f32 %v1193, %v1239
    %v1254 = vmul.f32 %v1194, %v1239
    %v1255 = vmul.f32 %v1195, %v1239
    %v1256 = vlaneseq
    %v1257 = vshrl.u32 %v1256, 7
    %v1258 = vsub.s32 0, %v1257
    %v1259 = vrot.slane %v1120, %v1258
    %v1260 = vmul.f32 %v1200, %v1259
    %v1261 = vmul.f32 %v1201, %v1259
    %v1262 = vmul.f32 %v1202, %v1259
    %v1263 = vmul.f32 %v1203, %v1259
    %v1264 = vmul.f32 %v1204, %v1259
    %v1265 = vmul.f32 %v1205, %v1259
    %v1266 = vmul.f32 %v1206, %v1259
    %v1267 = vmul.f32 %v1207, %v1259
    %v1268 = vmul.f32 %v1208, %v1259
    %v1269 = vmul.f32 %v1209, %v1259
    %v1270 = vmul.f32 %v1210, %v1259
    %v1271 = vmul.f32 %v1211, %v1259
    %v1272 = vmul.f32 %v1212, %v1259
    %v1273 = vmul.f32 %v1213, %v1259
    %v1274 = vmul.f32 %v1214, %v1259
    %v1275 = vmul.f32 %v1215, %v1259
    %v1276 = vadd.f32 %v1240, %v1260
    %v1277 = vadd.f32 %v1241, %v1261
    %v1278 = vadd.f32 %v1242, %v1262
    %v1279 = vadd.f32 %v1243, %v1263
    %v1280 = vadd.f32 %v1244, %v1264
    %v1281 = vadd.f32 %v1245, %v1265
    %v1282 = vadd.f32 %v1246, %v1266
    %v1283 = vadd.f32 %v1247, %v1267
    %v1284 = vadd.f32 %v1248, %v1268
    %v1285 = vadd.f32 %v1249, %v1269
    %v1286 = vadd.f32 %v1250, %v1270
    %v1287 = vadd.f32 %v1251, %v1271
    %v1288 = vadd.f32 %v1252, %v1272
    %v1289 = vadd.f32 %v1253, %v1273
    %v1290 = vadd.f32 %v1254, %v1274
    %v1291 = vadd.f32 %v1255, %v1275
    %v1292 = vlaneseq
    %v1293 = vshrl.u32 %v1292, 7
    %v1294 = vsub.s32 0, %v1293
    %v1295 = vrot.slane %v1122, %v1294
    %v1296 = vmul.f32 %v1220, %v1295
    %v1297 = vmul.f32 %v1221, %v1295
    %v1298 = vmul.f32 %v1222, %v1295
    %v1299 = vmul.f32 %v1223, %v1295
    %v1300 = vmul.f32 %v1224, %v1295
    %v1301 = vmul.f32 %v1225, %v1295
    %v1302 = vmul.f32 %v1226, %v1295
    %v1303 = vmul.f32 %v1227, %v1295
    %v1304 = vmul.f32 %v1228, %v1295
    %v1305 = vmul.f32 %v1229, %v1295
    %v1306 = vmul.f32 %v1230, %v1295
    %v1307 = vmul.f32 %v1231, %v1295
    %v1308 = vmul.f32 %v1232, %v1295
    %v1309 = vmul.f32 %v1233, %v1295
    %v1310 = vmul.f32 %v1234, %v1295
    %v1311 = vmul.f32 %v1235, %v1295
    %v1312 = vadd.f32 %v1276, %v1296
    %v1313 = vadd.f32 %v1277, %v1297
    %v1314 = vadd.f32 %v1278, %v1298
    %v1315 = vadd.f32 %v1279, %v1299
    %v1316 = vadd.f32 %v1280, %v1300
    %v1317 = vadd.f32 %v1281, %v1301
    %v1318 = vadd.f32 %v1282, %v1302
    %v1319 = vadd.f32 %v1283, %v1303
    %v1320 = vadd.f32 %v1284, %v1304
    %v1321 = vadd.f32 %v1285, %v1305
    %v1322 = vadd.f32 %v1286, %v1306
    %v1323 = vadd.f32 %v1287, %v1307
    %v1324 = vadd.f32 %v1288, %v1308
    %v1325 = vadd.f32 %v1289, %v1309
    %v1326 = vadd.f32 %v1290, %v1310
    %v1327 = vadd.f32 %v1291, %v1311
    %v1328 = vmul.f32 %v1180, %v1180
    %v1329 = vmul.f32 %v1181, %v1181
    %v1330 = vmul.f32 %v1182, %v1182
    %v1331 = vmul.f32 %v1183, %v1183
    %v1332 = vmul.f32 %v1184, %v1184
    %v1333 = vmul.f32 %v1185, %v1185
    %v1334 = vmul.f32 %v1186, %v1186
    %v1335 = vmul.f32 %v1187, %v1187
    %v1336 = vmul.f32 %v1188, %v1188
    %v1337 = vmul.f32 %v1189, %v1189
    %v1338 = vmul.f32 %v1190, %v1190
    %v1339 = vmul.f32 %v1191, %v1191
    %v1340 = vmul.f32 %v1192, %v1192
    %v1341 = vmul.f32 %v1193, %v1193
    %v1342 = vmul.f32 %v1194, %v1194
    %v1343 = vmul.f32 %v1195, %v1195
    %v1344 = vmul.f32 %v1200, %v1200
    %v1345 = vmul.f32 %v1201, %v1201
    %v1346 = vmul.f32 %v1202, %v1202
    %v1347 = vmul.f32 %v1203, %v1203
    %v1348 = vmul.f32 %v1204, %v1204
    %v1349 = vmul.f32 %v1205, %v1205
    %v1350 = vmul.f32 %v1206, %v1206
    %v1351 = vmul.f32 %v1207, %v1207
    %v1352 = vmul.f32 %v1208, %v1208
    %v1353 = vmul.f32 %v1209, %v1209
    %v1354 = vmul.f32 %v1210, %v1210
    %v1355 = vmul.f32 %v1211, %v1211
    %v1356 = vmul.f32 %v1212, %v1212
    %v1357 = vmul.f32 %v1213, %v1213
    %v1358 = vmul.f32 %v1214, %v1214
    %v1359 = vmul.f32 %v1215, %v1215
    %v1360 = vadd.f32 %v1328, %v1344
    %v1361 = vadd.f32 %v1329, %v1345
    %v1362 = vadd.f32 %v1330, %v1346
    %v1363 = vadd.f32 %v1331, %v1347
    %v1364 = vadd.f32 %v1332, %v1348
    %v1365 = vadd.f32 %v1333, %v1349
    %v1366 = vadd.f32 %v1334, %v1350
    %v1367 = vadd.f32 %v1335, %v1351
    %v1368 = vadd.f32 %v1336, %v1352
    %v1369 = vadd.f32 %v1337, %v1353
    %v1370 = vadd.f32 %v1338, %v1354
    %v1371 = vadd.f32 %v1339, %v1355
    %v1372 = vadd.f32 %v1340, %v1356
    %v1373 = vadd.f32 %v1341, %v1357
    %v1374 = vadd.f32 %v1342, %v1358
    %v1375 = vadd.f32 %v1343, %v1359
    %v1376 = vmul.f32 %v1220, %v1220
    %v1377 = vmul.f32 %v1221, %v1221
    %v1378 = vmul.f32 %v1222, %v1222
    %v1379 = vmul.f32 %v1223, %v1223
    %v1380 = vmul.f32 %v1224, %v1224
    %v1381 = vmul.f32 %v1225, %v1225
    %v1382 = vmul.f32 %v1226, %v1226
    %v1383 = vmul.f32 %v1227, %v1227
    %v1384 = vmul.f32 %v1228, %v1228
    %v1385 = vmul.f32 %v1229, %v1229
    %v1386 = vmul.f32 %v1230, %v1230
    %v1387 = vmul.f32 %v1231, %v1231
    %v1388 = vmul.f32 %v1232, %v1232
    %v1389 = vmul.f32 %v1233, %v1233
    %v1390 = vmul.f32 %v1234, %v1234
    %v1391 = vmul.f32 %v1235, %v1235
    %v1392 = vadd.f32 %v1360, %v1376
    %v1393 = vadd.f32 %v1361, %v1377
    %v1394 = vadd.f32 %v1362, %v1378
    %v1395 = vadd.f32 %v1363, %v1379
    %v1396 = vadd.f32 %v1364, %v1380
    %v1397 = vadd.f32 %v1365, %v1381
    %v1398 = vadd.f32 %v1366, %v1382
    %v1399 = vadd.f32 %v1367, %v1383
    %v1400 = vadd.f32 %v1368, %v1384
    %v1401 = vadd.f32 %v1369, %v1385
    %v1402 = vadd.f32 %v1370, %v1386
    %v1403 = vadd.f32 %v1371, %v1387
    %v1404 = vadd.f32 %v1372, %v1388
    %v1405 = vadd.f32 %v1373, %v1389
    %v1406 = vadd.f32 %v1374, %v1390
    %v1407 = vadd.f32 %v1375, %v1391
    %v1408 = vmul.f32 %v1312, %v1312
    %v1409 = vmul.f32 %v1313, %v1313
    %v1410 = vmul.f32 %v1314, %v1314
    %v1411 = vmul.f32 %v1315, %v1315
    %v1412 = vmul.f32 %v1316, %v1316
    %v1413 = vmul.f32 %v1317, %v1317
    %v1414 = vmul.f32 %v1318, %v1318
    %v1415 = vmul.f32 %v1319, %v1319
    %v1416 = vmul.f32 %v1320, %v1320
    %v1417 = vmul.f32 %v1321, %v1321
    %v1418 = vmul.f32 %v1322, %v1322
    %v1419 = vmul.f32 %v1323, %v1323
    %v1420 = vmul.f32 %v1324, %v1324
    %v1421 = vmul.f32 %v1325, %v1325
    %v1422 = vmul.f32 %v1326, %v1326
    %v1423 = vmul.f32 %v1327, %v1327
    %v1424 = vsub.f32 %v1392, %v1408
    %v1425 = vsub.f32 %v1393, %v1409
    %v1426 = vsub.f32 %v1394, %v1410
    %v1427 = vsub.f32 %v1395, %v1411
    %v1428 = vsub.f32 %v1396, %v1412
    %v1429 = vsub.f32 %v1397, %v1413
    %v1430 = vsub.f32 %v1398, %v1414
    %v1431 = vsub.f32 %v1399, %v1415
    %v1432 = vsub.f32 %v1400, %v1416
    %v1433 = vsub.f32 %v1401, %v1417
    %v1434 = vsub.f32 %v1402, %v1418
    %v1435 = vsub.f32 %v1403, %v1419
    %v1436 = vsub.f32 %v1404, %v1420
    %v1437 = vsub.f32 %v1405, %v1421
    %v1438 = vsub.f32 %v1406, %v1422
    %v1439 = vsub.f32 %v1407, %v1423
    %v1440 = vmax.f32 %v1424, 0.0
    %v1441 = vmax.f32 %v1425, 0.0
    %v1442 = vmax.f32 %v1426, 0.0
    %v1443 = vmax.f32 %v1427, 0.0
    %v1444 = vmax.f32 %v1428, 0.0
    %v1445 = vmax.f32 %v1429, 0.0
    %v1446 = vmax.f32 %v1430, 0.0
    %v1447 = vmax.f32 %v1431, 0.0
    %v1448 = vmax.f32 %v1432, 0.0
    %v1449 = vmax.f32 %v1433, 0.0
    %v1450 = vmax.f32 %v1434, 0.0
    %v1451 = vmax.f32 %v1435, 0.0
    %v1452 = vmax.f32 %v1436, 0.0
    %v1453 = vmax.f32 %v1437, 0.0
    %v1454 = vmax.f32 %v1438, 0.0
    %v1455 = vmax.f32 %v1439, 0.0
    %v1456 = vrsqrt.pop %v1440
    %v1457 = vmul.f32 %v1440, %v1456
    %vm1458 = vcmp.eq.f32.partialorder %v1440, inf
    %v1459 = vsel %vm1458, %v1440, %v1457
    %vm1460 = vcmp.eq.f32.partialorder %v1440, 0.0
    %v1461 = vand.u32 %v1440, 2147483648
    %v1462 = vsel %vm1460, %v1461, %v1459
    %v1463 = vrsqrt.pop %v1441
    %v1464 = vmul.f32 %v1441, %v1463
    %vm1465 = vcmp.eq.f32.partialorder %v1441, inf
    %v1466 = vsel %vm1465, %v1441, %v1464
    %vm1467 = vcmp.eq.f32.partialorder %v1441, 0.0
    %v1468 = vand.u32 %v1441, 2147483648
    %v1469 = vsel %vm1467, %v1468, %v1466
    %v1470 = vrsqrt.pop %v1442
    %v1471 = vmul.f32 %v1442, %v1470
    %vm1472 = vcmp.eq.f32.partialorder %v1442, inf
    %v1473 = vsel %vm1472, %v1442, %v1471
    %vm1474 = vcmp.eq.f32.partialorder %v1442, 0.0
    %v1475 = vand.u32 %v1442, 2147483648
    %v1476 = vsel %vm1474, %v1475, %v1473
    %v1477 = vrsqrt.pop %v1443
    %v1478 = vmul.f32 %v1443, %v1477
    %vm1479 = vcmp.eq.f32.partialorder %v1443, inf
    %v1480 = vsel %vm1479, %v1443, %v1478
    %vm1481 = vcmp.eq.f32.partialorder %v1443, 0.0
    %v1482 = vand.u32 %v1443, 2147483648
    %v1483 = vsel %vm1481, %v1482, %v1480
    %v1484 = vrsqrt.pop %v1444
    %v1485 = vmul.f32 %v1444, %v1484
    %vm1486 = vcmp.eq.f32.partialorder %v1444, inf
    %v1487 = vsel %vm1486, %v1444, %v1485
    %vm1488 = vcmp.eq.f32.partialorder %v1444, 0.0
    %v1489 = vand.u32 %v1444, 2147483648
    %v1490 = vsel %vm1488, %v1489, %v1487
    %v1491 = vrsqrt.pop %v1445
    %v1492 = vmul.f32 %v1445, %v1491
    %vm1493 = vcmp.eq.f32.partialorder %v1445, inf
    %v1494 = vsel %vm1493, %v1445, %v1492
    %vm1495 = vcmp.eq.f32.partialorder %v1445, 0.0
    %v1496 = vand.u32 %v1445, 2147483648
    %v1497 = vsel %vm1495, %v1496, %v1494
    %v1498 = vrsqrt.pop %v1446
    %v1499 = vmul.f32 %v1446, %v1498
    %vm1500 = vcmp.eq.f32.partialorder %v1446, inf
    %v1501 = vsel %vm1500, %v1446, %v1499
    %vm1502 = vcmp.eq.f32.partialorder %v1446, 0.0
    %v1503 = vand.u32 %v1446, 2147483648
    %v1504 = vsel %vm1502, %v1503, %v1501
    %v1505 = vrsqrt.pop %v1447
    %v1506 = vmul.f32 %v1447, %v1505
    %vm1507 = vcmp.eq.f32.partialorder %v1447, inf
    %v1508 = vsel %vm1507, %v1447, %v1506
    %vm1509 = vcmp.eq.f32.partialorder %v1447, 0.0
    %v1510 = vand.u32 %v1447, 2147483648
    %v1511 = vsel %vm1509, %v1510, %v1508
    %v1512 = vrsqrt.pop %v1448
    %v1513 = vmul.f32 %v1448, %v1512
    %vm1514 = vcmp.eq.f32.partialorder %v1448, inf
    %v1515 = vsel %vm1514, %v1448, %v1513
    %vm1516 = vcmp.eq.f32.partialorder %v1448, 0.0
    %v1517 = vand.u32 %v1448, 2147483648
    %v1518 = vsel %vm1516, %v1517, %v1515
    %v1519 = vrsqrt.pop %v1449
    %v1520 = vmul.f32 %v1449, %v1519
    %vm1521 = vcmp.eq.f32.partialorder %v1449, inf
    %v1522 = vsel %vm1521, %v1449, %v1520
    %vm1523 = vcmp.eq.f32.partialorder %v1449, 0.0
    %v1524 = vand.u32 %v1449, 2147483648
    %v1525 = vsel %vm1523, %v1524, %v1522
    %v1526 = vrsqrt.pop %v1450
    %v1527 = vmul.f32 %v1450, %v1526
    %vm1528 = vcmp.eq.f32.partialorder %v1450, inf
    %v1529 = vsel %vm1528, %v1450, %v1527
    %vm1530 = vcmp.eq.f32.partialorder %v1450, 0.0
    %v1531 = vand.u32 %v1450, 2147483648
    %v1532 = vsel %vm1530, %v1531, %v1529
    %v1533 = vrsqrt.pop %v1451
    %v1534 = vmul.f32 %v1451, %v1533
    %vm1535 = vcmp.eq.f32.partialorder %v1451, inf
    %v1536 = vsel %vm1535, %v1451, %v1534
    %vm1537 = vcmp.eq.f32.partialorder %v1451, 0.0
    %v1538 = vand.u32 %v1451, 2147483648
    %v1539 = vsel %vm1537, %v1538, %v1536
    %v1540 = vrsqrt.pop %v1452
    %v1541 = vmul.f32 %v1452, %v1540
    %vm1542 = vcmp.eq.f32.partialorder %v1452, inf
    %v1543 = vsel %vm1542, %v1452, %v1541
    %vm1544 = vcmp.eq.f32.partialorder %v1452, 0.0
    %v1545 = vand.u32 %v1452, 2147483648
    %v1546 = vsel %vm1544, %v1545, %v1543
    %v1547 = vrsqrt.pop %v1453
    %v1548 = vmul.f32 %v1453, %v1547
    %vm1549 = vcmp.eq.f32.partialorder %v1453, inf
    %v1550 = vsel %vm1549, %v1453, %v1548
    %vm1551 = vcmp.eq.f32.partialorder %v1453, 0.0
    %v1552 = vand.u32 %v1453, 2147483648
    %v1553 = vsel %vm1551, %v1552, %v1550
    %v1554 = vrsqrt.pop %v1454
    %v1555 = vmul.f32 %v1454, %v1554
    %vm1556 = vcmp.eq.f32.partialorder %v1454, inf
    %v1557 = vsel %vm1556, %v1454, %v1555
    %vm1558 = vcmp.eq.f32.partialorder %v1454, 0.0
    %v1559 = vand.u32 %v1454, 2147483648
    %v1560 = vsel %vm1558, %v1559, %v1557
    %v1561 = vrsqrt.pop %v1455
    %v1562 = vmul.f32 %v1455, %v1561
    %vm1563 = vcmp.eq.f32.partialorder %v1455, inf
    %v1564 = vsel %vm1563, %v1455, %v1562
    %vm1565 = vcmp.eq.f32.partialorder %v1455, 0.0
    %v1566 = vand.u32 %v1455, 2147483648
    %v1567 = vsel %vm1565, %v1566, %v1564
    %v1568 = vmul.f32 %v1312, %v1462
    %v1569 = vmul.f32 %v1313, %v1469
    %v1570 = vmul.f32 %v1314, %v1476
    %v1571 = vmul.f32 %v1315, %v1483
    %v1572 = vmul.f32 %v1316, %v1490
    %v1573 = vmul.f32 %v1317, %v1497
    %v1574 = vmul.f32 %v1318, %v1504
    %v1575 = vmul.f32 %v1319, %v1511
    %v1576 = vmul.f32 %v1320, %v1518
    %v1577 = vmul.f32 %v1321, %v1525
    %v1578 = vmul.f32 %v1322, %v1532
    %v1579 = vmul.f32 %v1323, %v1539
    %v1580 = vmul.f32 %v1324, %v1546
    %v1581 = vmul.f32 %v1325, %v1553
    %v1582 = vmul.f32 %v1326, %v1560
    %v1583 = vmul.f32 %v1327, %v1567
    %v1584 = vmul.f32 %v1160, %v1568
    %v1585 = vmul.f32 %v1161, %v1569
    %v1586 = vmul.f32 %v1162, %v1570
    %v1587 = vmul.f32 %v1163, %v1571
    %v1588 = vmul.f32 %v1164, %v1572
    %v1589 = vmul.f32 %v1165, %v1573
    %v1590 = vmul.f32 %v1166, %v1574
    %v1591 = vmul.f32 %v1167, %v1575
    %v1592 = vmul.f32 %v1168, %v1576
    %v1593 = vmul.f32 %v1169, %v1577
    %v1594 = vmul.f32 %v1170, %v1578
    %v1595 = vmul.f32 %v1171, %v1579
    %v1596 = vmul.f32 %v1172, %v1580
    %v1597 = vmul.f32 %v1173, %v1581
    %v1598 = vmul.f32 %v1174, %v1582
    %v1599 = vmul.f32 %v1175, %v1583
    %v1600 = vadd.f32 %v1584, %v1585
    %v1601 = vadd.f32 %v1600, %v1586
    %v1602 = vadd.f32 %v1601, %v1587
    %v1603 = vadd.f32 %v1602, %v1588
    %v1604 = vadd.f32 %v1603, %v1589
    %v1605 = vadd.f32 %v1604, %v1590
    %v1606 = vadd.f32 %v1605, %v1591
    %v1607 = vadd.f32 %v1606, %v1592
    %v1608 = vadd.f32 %v1607, %v1593
    %v1609 = vadd.f32 %v1608, %v1594
    %v1610 = vadd.f32 %v1609, %v1595
    %v1611 = vadd.f32 %v1610, %v1596
    %v1612 = vadd.f32 %v1611, %v1597
    %v1613 = vadd.f32 %v1612, %v1598
    %v1614 = vadd.f32 %v1613, %v1599
    %v1615 = vrot.slane %v1614, 4
    %v1616 = vadd.f32 %v1614, %v1615
    %v1617 = vrot.slane %v1616, 2
    %v1618 = vadd.f32 %v1616, %v1617
    %v1619 = vrot.slane %v1618, 1
    %v1620 = vadd.f32 %v1618, %v1619
    %v1622 = vrot.slane %v216, 7
    %v1625 = vrot.slane %v217, 6
    %v1628 = vrot.slane %v218, 5
    %v1631 = vrot.slane %v443, 4
    %v1634 = vrot.slane %v445, 3
    %v1637 = vrot.slane %v447, 2
    %v1640 = vrot.slane %v450, 1
    %v1643 = vrot.slane %v455, 7
    %v1646 = vrot.slane %v1110, 6
    %v1649 = vrot.slane %v1104, 5
    %v1652 = vrot.slane %v1118, 4
    %v1655 = vrot.slane %v1120, 3
    %v1658 = vrot.slane %v1122, 2
    %vm1660 = vcmask 1040384
    %v1661 = vsel %vm1660, %v39, %v1622
    %vm1662 = vcmask 1041408
    %v1663 = vsel %vm1662, %v1661, %v1625
    %vm1664 = vcmask 1042432
    %v1665 = vsel %vm1664, %v1663, %v1628
    %vm1666 = vcmask 1043456
    %v1667 = vsel %vm1666, %v1665, %v1631
    %vm1668 = vcmask 1044480
    %v1669 = vsel %vm1668, %v1667, %v1634
    %vm1670 = vcmask 1045504
    %v1671 = vsel %vm1670, %v1669, %v1637
    %vm1672 = vcmask 1046528
    %v1673 = vsel %vm1672, %v1671, %v1640
    %v1674 = vsel %vm1660, %v452, %v1643
    %v1675 = vsel %vm1662, %v1674, %v1646
    %v1676 = vsel %vm1664, %v1675, %v1649
    %v1677 = vsel %vm1666, %v1676, %v1652
    %v1678 = vsel %vm1668, %v1677, %v1655
    %v1679 = vsel %vm1670, %v1678, %v1658
    %v1680 = vsel %vm1672, %v1679, %v1620
    %1681 = vst [vmem:[#allocation7] sm:$0xff] %v1673
    %1682 = vst [vmem:[#allocation7 + $0x8] sm:$0xff] %v1680
    %1683 = vst [vmem:[#allocation7 + $0x10] sm:$0xff] 0.0
    // Predicated region
    $region18: #{tpu_custom_call.1} parent=1 // pred_check
      _
    $region19: #{tpu_custom_call.1} parent=1 // pred_check_branch
      %1685 = sbr.rel (0) target = $region21
    $region20: #{tpu_custom_call.1} parent=1 // pred_region
      %s1687 = ssub.s32 384, 384
      %1688 = vsyncadd [#allocation4], %s1687
      %s1689 = sshll.u32 [#allocation7], 4
      %s1690 = int_to_ptr.vmem [resolvable:$true] %s1689
      %1695 = dma.vmem_to_hbm [thread:$0]  %s1690, 384, %s2, [#allocation4], 128, 128, 8
    $region21: #{tpu_custom_call.1} parent=1 // pred_fallthru
      _
    // Predicated region
    $region22: #{tpu_custom_call.1} parent=1 // pred_check
      _
    $region23: #{tpu_custom_call.1} parent=1 // pred_check_branch
      %1697 = sbr.rel (0) target = $region25
    $region24: #{tpu_custom_call.1} parent=1 // pred_region
      %1698 = dma.done [#allocation4], 384
    $region25: #{tpu_custom_call.1} parent=1 // pred_fallthru
      _
    %1699 = vsyncpa [#allocation3], 1
    %1700 = vsyncpa [#allocation6], 1
    %1701 = vsyncpa [#allocation4], 1

</llo_original>
